<compile_context>
chip_gen: v7x
topology: tpu7x:2x2x1
jax: 0.10.0
libtpu: 0.0.40
codegen_flags: <defaults>
</compile_context>

<pallas_src>
import math

import jax
import jax.numpy as jnp
from jax.experimental import pallas as pl
from jax.experimental.pallas import tpu as pltpu

_NEG_INF = -1e30


def _make_kernel(block_b, t, t_mem, t_mem_pad, c, n_head, mm_dtype,
                 approx_recip, fuse_kv):
    d = c // n_head

    def _attention(q2d, k2d, v2d, wp_ref, bp_ref, y_ref, att_ref):
        """q2d: (block_b*t, c) f32 (1/sqrt(d) already folded into Wq);
        k2d/v2d: (block_b*t_mem_pad, c) f32."""
        # Pad-column mask hoisted out of the head loop (built once per step).
        mask = None
        if t_mem_pad != t_mem:
            col = jax.lax.broadcasted_iota(jnp.int32, (block_b, t, t_mem_pad), 2)
            mask = col < t_mem

        att_sum = jnp.zeros((block_b, t, t_mem_pad), jnp.float32)
        y2d = jnp.zeros((block_b * t, c), jnp.float32)

        for h in range(n_head):                       # static unroll over heads
            lo = h * d
            # Single static lane slice per head (no stack / no concat).
            q_h = q2d[:, lo:lo + d].reshape(block_b, t, d).astype(mm_dtype)
            k_h = k2d[:, lo:lo + d].reshape(block_b, t_mem_pad, d).astype(mm_dtype)
            v_h = v2d[:, lo:lo + d].reshape(block_b, t_mem_pad, d).astype(mm_dtype)

            # Scaled dot-product attention (scale pre-folded into Wq / bq).
            s = jnp.einsum('btd,bmd->btm', q_h, k_h,
                           preferred_element_type=jnp.float32)
            if mask is not None:
                s = jnp.where(mask, s, _NEG_INF)      # padded mem cols -> prob 0
            p = jnp.exp(s - jnp.max(s, axis=-1, keepdims=True))
            denom = jnp.sum(p, axis=-1, keepdims=True)
            p = p * pl.reciprocal(denom, approx=approx_recip)     # f32 probs
            att_sum = att_sum + p

            ctx = jnp.einsum('btm,bmd->btd', p.astype(mm_dtype), v_h,
                             preferred_element_type=jnp.float32)

            # Head-merge folded into the output projection: y += ctx_h @ Wp[h].
            y2d = y2d + jnp.dot(ctx.reshape(block_b * t, d).astype(mm_dtype),
                                wp_ref[h], preferred_element_type=jnp.float32)

        y2d = y2d + bp_ref[...]
        y_ref[...] = y2d.reshape(block_b, t, c).astype(y_ref.dtype)
        # Head-mean attention map; lane-dense store (t_mem_pad % 128 == 0).
        att_ref[...] = (att_sum * (1.0 / n_head)).astype(att_ref.dtype)

    if fuse_kv:
        def kernel(qin_ref, kvin_ref, wq_ref, bq_ref, wkv_ref, bkv_ref,
                   wp_ref, bp_ref, y_ref, att_ref):
            x_q = qin_ref[...].reshape(block_b * t, c).astype(mm_dtype)
            x_kv = kvin_ref[...].reshape(block_b * t_mem_pad, c).astype(mm_dtype)
            q2d = jnp.dot(x_q, wq_ref[...],
                          preferred_element_type=jnp.float32) + bq_ref[...]
            # Fused K|V projection: one matmul with doubled output width.
            kv2d = jnp.dot(x_kv, wkv_ref[...],
                           preferred_element_type=jnp.float32) + bkv_ref[...]
            _attention(q2d, kv2d[:, :c], kv2d[:, c:],
                       wp_ref, bp_ref, y_ref, att_ref)
    else:
        def kernel(qin_ref, kin_ref, vin_ref, wq_ref, bq_ref, wk_ref, bk_ref,
                   wv_ref, bv_ref, wp_ref, bp_ref, y_ref, att_ref):
            x_q = qin_ref[...].reshape(block_b * t, c).astype(mm_dtype)
            x_k = kin_ref[...].reshape(block_b * t_mem_pad, c).astype(mm_dtype)
            x_v = vin_ref[...].reshape(block_b * t_mem_pad, c).astype(mm_dtype)
            q2d = jnp.dot(x_q, wq_ref[...],
                          preferred_element_type=jnp.float32) + bq_ref[...]
            k2d = jnp.dot(x_k, wk_ref[...],
                          preferred_element_type=jnp.float32) + bk_ref[...]
            v2d = jnp.dot(x_v, wv_ref[...],
                          preferred_element_type=jnp.float32) + bv_ref[...]
            _attention(q2d, k2d, v2d, wp_ref, bp_ref, y_ref, att_ref)

    return kernel


def _vmem_capacity_bytes():
    """Generation-aware VMEM capacity (v5e/v6e 128 MiB, v7x 64 MiB per TC)."""
    try:
        cap = getattr(pltpu.get_tpu_info(), "vmem_capacity_bytes", None)
        if cap:
            return int(cap)
    except Exception:
        pass
    return 64 * 1024 * 1024   # conservative fallback (v7x per-core)


def _per_batch_vmem_bytes(t, t_mem_pad, c, n_head, in_bytes, mm_bytes,
                          y_bytes, att_bytes, fuse_kv):
    d = c // n_head
    n_kv_in = 1 if fuse_kv else 2
    # Double-buffered streamed inputs + outputs.
    io = 2 * (t * c * in_bytes + n_kv_in * t_mem_pad * c * in_bytes
              + t * c * y_bytes + t * t_mem_pad * att_bytes)
    # Resident in-kernel intermediates: f32 projections (+ mm_dtype copies),
    # one head's scores/probs live at a time, att-mean and y accumulators.
    inter = (4 + mm_bytes) * (t * c + 2 * t_mem_pad * c)
    inter += 4 * 3 * t * t_mem_pad            # scores + probs + att_sum
    inter += 4 * (t * d + t * c)              # ctx_h + y accumulator
    return io + inter


def _pick_block_b(b, per_batch_bytes, budget_bytes, min_grid_steps=2):
    """Largest divisor of b that keeps >= min_grid_steps grid steps (pipeline
    depth / v7x megacore) and keeps the per-step working set inside budget."""
    best = 1
    for cand in range(1, b + 1):
        if b % cand:
            continue
        if b // cand < min(min_grid_steps, b):
            continue
        if cand * per_batch_bytes > budget_bytes:
            continue
        best = cand
    return best


def mha_with_attention(q_in, k_in, v_in, params, n_head, *,
                       block_b=None,
                       matmul_dtype=jnp.bfloat16,   # MXU inputs; accum stays f32
                       approx_recip=True,           # EUP reciprocal for softmax
                       att_dtype=jnp.bfloat16,      # attention-map writeback
                       fuse_kv=None,
                       min_grid_steps=2):
    """params: dict with wq,bq,wk,bk,wv,bv,wp,bp in PyTorch layout
    (weights (out, in), biases (out,)).  Returns (y, attention)."""
    b, t, c = q_in.shape
    _, t_mem, _ = k_in.shape
    assert c % n_head == 0
    d = c // n_head

    if fuse_kv is None:
        fuse_kv = k_in is v_in     # common transfuser case: shared KV memory

    # Lane-dense attention output + 128-aligned memory axis: pad T_mem to a
    # multiple of 128 (zero rows; masked to prob 0 in-kernel; sliced off below).
    t_mem_pad = ((t_mem + 127) // 128) * 128
    pad = ((0, 0), (0, t_mem_pad - t_mem), (0, 0))
    if fuse_kv:
        kv_in_p = jnp.pad(k_in, pad) if t_mem_pad != t_mem else k_in
    else:
        k_in_p = jnp.pad(k_in, pad) if t_mem_pad != t_mem else k_in
        v_in_p = jnp.pad(v_in, pad) if t_mem_pad != t_mem else v_in

    mm_bytes = jnp.dtype(matmul_dtype).itemsize
    vmem_cap = _vmem_capacity_bytes()
    if block_b is None:
        per_batch = _per_batch_vmem_bytes(
            t, t_mem_pad, c, n_head,
            in_bytes=jnp.dtype(q_in.dtype).itemsize, mm_bytes=mm_bytes,
            y_bytes=jnp.dtype(q_in.dtype).itemsize,
            att_bytes=jnp.dtype(att_dtype).itemsize, fuse_kv=fuse_kv)
        block_b = _pick_block_b(b, per_batch, budget_bytes=vmem_cap // 4,
                                min_grid_steps=min_grid_steps)
    assert b % block_b == 0
    grid_b = b // block_b

    # Weights pre-transposed to (in, out); 1/sqrt(d) folded into the query
    # projection; output projection pre-split per head -> (n_head, d, c) so the
    # kernel only indexes its leading dim (no in-kernel weight slicing).
    scale = 1.0 / math.sqrt(d)
    wq = (params["wq"].T * scale).astype(matmul_dtype)
    bq = (params["bq"] * scale).reshape(1, c).astype(jnp.float32)
    wp = params["wp"].T.reshape(n_head, d, c).astype(matmul_dtype)
    bp = params["bp"].reshape(1, c).astype(jnp.float32)

    kernel = _make_kernel(block_b, t, t_mem, t_mem_pad, c, n_head,
                          matmul_dtype, approx_recip, fuse_kv)

    seq_q = pl.BlockSpec((block_b, t, c), lambda i: (i, 0, 0))
    seq_kv = pl.BlockSpec((block_b, t_mem_pad, c), lambda i: (i, 0, 0))

    def w_spec(shape):
        return pl.BlockSpec(shape, lambda i: (0,) * len(shape))

    if fuse_kv:
        wkv = jnp.concatenate([params["wk"].T, params["wv"].T],
                              axis=1).astype(matmul_dtype)
        bkv = jnp.concatenate([params["bk"], params["bv"]]
                              ).reshape(1, 2 * c).astype(jnp.float32)
        args = (q_in, kv_in_p, wq, bq, wkv, bkv, wp, bp)
        in_specs = [seq_q, seq_kv,
                    w_spec((c, c)), w_spec((1, c)),
                    w_spec((c, 2 * c)), w_spec((1, 2 * c)),
                    w_spec((n_head, d, c)), w_spec((1, c))]
    else:
        wk = params["wk"].T.astype(matmul_dtype)
        bk = params["bk"].reshape(1, c).astype(jnp.float32)
        wv = params["wv"].T.astype(matmul_dtype)
        bv = params["bv"].reshape(1, c).astype(jnp.float32)
        args = (q_in, k_in_p, v_in_p, wq, bq, wk, bk, wv, bv, wp, bp)
        in_specs = [seq_q, seq_kv, seq_kv,
                    w_spec((c, c)), w_spec((1, c)),
                    w_spec((c, c)), w_spec((1, c)),
                    w_spec((c, c)), w_spec((1, c)),
                    w_spec((n_head, d, c)), w_spec((1, c))]

    y, att = pl.pallas_call(
        kernel,
        out_shape=(
            jax.ShapeDtypeStruct((b, t, c), q_in.dtype),
            jax.ShapeDtypeStruct((b, t, t_mem_pad), att_dtype),
        ),
        grid_spec=pltpu.PrefetchScalarGridSpec(
            num_scalar_prefetch=0,
            grid=(grid_b,),
            in_specs=in_specs,
            out_specs=[
                pl.BlockSpec((block_b, t, c), lambda i: (i, 0, 0)),
                pl.BlockSpec((block_b, t, t_mem_pad), lambda i: (i, 0, 0)),
            ],
        ),
        compiler_params=pltpu.CompilerParams(
            dimension_semantics=("parallel",),
            vmem_limit_bytes=int(min(vmem_cap // 2, 96 * 1024 * 1024))),
    )(*args)

    if t_mem_pad != t_mem:
        att = att[:, :, :t_mem]
    return y, att


def _reference(q_in, k_in, v_in, params, n_head):
    """Pure-JAX reference replicating the PyTorch forward (eval mode)."""
    b, t, c = q_in.shape
    _, t_mem, _ = k_in.shape
    d = c // n_head

    def lin(x, w, bb):
        return x @ w.T + bb

    q = lin(q_in, params["wq"], params["bq"]).reshape(b, t, n_head, d).transpose(0, 2, 1, 3)
    k = lin(k_in, params["wk"], params["bk"]).reshape(b, t_mem, n_head, d).transpose(0, 2, 1, 3)
    v = lin(v_in, params["wv"], params["bv"]).reshape(b, t_mem, n_head, d).transpose(0, 2, 1, 3)
    att = (q @ jnp.swapaxes(k, -2, -1)) * (1.0 / math.sqrt(d))
    att = jax.nn.softmax(att, axis=-1)
    y = att @ v
    y = jnp.swapaxes(y, 1, 2).reshape(b, t, c)
    y = lin(y, params["wp"], params["bp"])
    attention = jnp.mean(att, axis=1)
    return y, attention


if __name__ == "__main__":
    B, T, T_MEM, C, N_HEAD = 2, 8, 8, 32, 4

    key = jax.random.PRNGKey(0)
    keys = jax.random.split(key, 11)
    q_in = jax.random.normal(keys[0], (B, T, C), jnp.float32)
    k_in = jax.random.normal(keys[1], (B, T_MEM, C), jnp.float32)
    v_in = jax.random.normal(keys[2], (B, T_MEM, C), jnp.float32)

    s = 1.0 / math.sqrt(C)
    params = {
        "wq": jax.random.uniform(keys[3], (C, C), jnp.float32, -s, s),
        "bq": jax.random.uniform(keys[4], (C,), jnp.float32, -s, s),
        "wk": jax.random.uniform(keys[5], (C, C), jnp.float32, -s, s),
        "bk": jax.random.uniform(keys[6], (C,), jnp.float32, -s, s),
        "wv": jax.random.uniform(keys[7], (C, C), jnp.float32, -s, s),
        "bv": jax.random.uniform(keys[8], (C,), jnp.float32, -s, s),
        "wp": jax.random.uniform(keys[9], (C, C), jnp.float32, -s, s),
        "bp": jax.random.uniform(keys[10], (C,), jnp.float32, -s, s),
    }

    # 1) Exact path (f32 MXU inputs, exact reciprocal), distinct K/V inputs.
    y_ref, att_ref = _reference(q_in, k_in, v_in, params, N_HEAD)
    y, att = mha_with_attention(q_in, k_in, v_in, params, N_HEAD,
                                matmul_dtype=jnp.float32,
                                approx_recip=False,
                                att_dtype=jnp.float32)
    jax.block_until_ready((y, att))
    assert y.shape == (B, T, C) and att.shape == (B, T, T_MEM)
    assert jnp.allclose(y, y_ref, atol=1e-4, rtol=1e-4), "output y mismatch"
    assert jnp.allclose(att, att_ref, atol=1e-5, rtol=1e-4), "attention mismatch"

    # 2) Exact path with shared KV memory -> exercises the fused K|V projection.
    y_ref_kv, att_ref_kv = _reference(q_in, k_in, k_in, params, N_HEAD)
    y_kv, att_kv = mha_with_attention(q_in, k_in, k_in, params, N_HEAD,
                                      matmul_dtype=jnp.float32,
                                      approx_recip=False,
                                      att_dtype=jnp.float32)
    jax.block_until_ready((y_kv, att_kv))
    assert jnp.allclose(y_kv, y_ref_kv, atol=1e-4, rtol=1e-4), "fused-KV y mismatch"
    assert jnp.allclose(att_kv, att_ref_kv, atol=1e-5, rtol=1e-4), \
        "fused-KV attention mismatch"

    # 3) Fast path (defaults): bf16 MXU inputs, f32 accumulation/softmax, EUP
    #    approx reciprocal, bf16 attention-map writeback -> loose sanity check.
    y_fast, att_fast = mha_with_attention(q_in, k_in, v_in, params, N_HEAD)
    jax.block_until_ready((y_fast, att_fast))
    assert jnp.allclose(y_fast, y_ref, atol=5e-2, rtol=5e-2), "bf16 y mismatch"
    assert jnp.allclose(att_fast.astype(jnp.float32), att_ref,
                        atol=5e-2, rtol=5e-2), "bf16 attention mismatch"

    print("KERNEL_OK")
</pallas_src>

<mosaic_0001>
module attributes {stable_mosaic.version = 11 : i64} {
  func.func @kernel(%arg0: i32, %arg1: memref<1x8x32xf32, #tpu.memory_space<vmem>>, %arg2: memref<1x128x32xf32, #tpu.memory_space<vmem>>, %arg3: memref<1x128x32xf32, #tpu.memory_space<vmem>>, %arg4: memref<32x32xf32, #tpu.memory_space<vmem>>, %arg5: memref<1x32xf32, #tpu.memory_space<vmem>>, %arg6: memref<32x32xf32, #tpu.memory_space<vmem>>, %arg7: memref<1x32xf32, #tpu.memory_space<vmem>>, %arg8: memref<32x32xf32, #tpu.memory_space<vmem>>, %arg9: memref<1x32xf32, #tpu.memory_space<vmem>>, %arg10: memref<4x8x32xf32, #tpu.memory_space<vmem>>, %arg11: memref<1x32xf32, #tpu.memory_space<vmem>>, %arg12: memref<1x8x32xf32, #tpu.memory_space<vmem>>, %arg13: memref<1x8x128xf32, #tpu.memory_space<vmem>>) attributes {dimension_semantics = [#tpu.dimension_semantics<parallel>], iteration_bounds = array<i64: 2>, scalar_prefetch = 0 : i64, scratch_operands = 0 : i64, tpu.core_type = #tpu.core_type<tc>, window_params = [{transform_indices = @transform_0, window_bounds = array<i64: 1, 8, 32>}, {transform_indices = @transform_1, window_bounds = array<i64: 1, 128, 32>}, {transform_indices = @transform_2, window_bounds = array<i64: 1, 128, 32>}, {pipeline_mode = #tpu.pipeline_mode<synchronous>, transform_indices = @transform_3, window_bounds = array<i64: 32, 32>}, {pipeline_mode = #tpu.pipeline_mode<synchronous>, transform_indices = @transform_4, window_bounds = array<i64: 1, 32>}, {pipeline_mode = #tpu.pipeline_mode<synchronous>, transform_indices = @transform_5, window_bounds = array<i64: 32, 32>}, {pipeline_mode = #tpu.pipeline_mode<synchronous>, transform_indices = @transform_6, window_bounds = array<i64: 1, 32>}, {pipeline_mode = #tpu.pipeline_mode<synchronous>, transform_indices = @transform_7, window_bounds = array<i64: 32, 32>}, {pipeline_mode = #tpu.pipeline_mode<synchronous>, transform_indices = @transform_8, window_bounds = array<i64: 1, 32>}, {pipeline_mode = #tpu.pipeline_mode<synchronous>, transform_indices = @transform_9, window_bounds = array<i64: 4, 8, 32>}, {pipeline_mode = #tpu.pipeline_mode<synchronous>, transform_indices = @transform_10, window_bounds = array<i64: 1, 32>}, {transform_indices = @transform_11, window_bounds = array<i64: 1, 8, 32>}, {transform_indices = @transform_12, window_bounds = array<i64: 1, 8, 128>}]} {
    %c0 = arith.constant 0 : index
    %c0_0 = arith.constant 0 : index
    %c0_1 = arith.constant 0 : index
    %0 = vector.load %arg1[%c0, %c0_0, %c0_1] : memref<1x8x32xf32, #tpu.memory_space<vmem>>, vector<1x8x32xf32>
    %1 = vector.shape_cast %0 : vector<1x8x32xf32> to vector<8x32xf32>
    %c0_2 = arith.constant 0 : index
    %c0_3 = arith.constant 0 : index
    %c0_4 = arith.constant 0 : index
    %2 = vector.load %arg2[%c0_2, %c0_3, %c0_4] : memref<1x128x32xf32, #tpu.memory_space<vmem>>, vector<1x128x32xf32>
    %3 = vector.shape_cast %2 : vector<1x128x32xf32> to vector<128x32xf32>
    %c0_5 = arith.constant 0 : index
    %c0_6 = arith.constant 0 : index
    %c0_7 = arith.constant 0 : index
    %4 = vector.load %arg3[%c0_5, %c0_6, %c0_7] : memref<1x128x32xf32, #tpu.memory_space<vmem>>, vector<1x128x32xf32>
    %5 = vector.shape_cast %4 : vector<1x128x32xf32> to vector<128x32xf32>
    %c0_8 = arith.constant 0 : index
    %c0_9 = arith.constant 0 : index
    %6 = vector.load %arg4[%c0_8, %c0_9] : memref<32x32xf32, #tpu.memory_space<vmem>>, vector<32x32xf32>
    %cst = arith.constant dense<0.000000e+00> : vector<8x32xf32>
    %7 = tpu.matmul %1, %6, %cst {dimension_numbers = #tpu.dot_dimension_numbers<[1], [0], [0], [1], [0, 0, 1, 1], [], []>} : vector<8x32xf32>, vector<32x32xf32>, vector<8x32xf32> -> vector<8x32xf32>
    %c0_10 = arith.constant 0 : index
    %c0_11 = arith.constant 0 : index
    %8 = vector.load %arg5[%c0_10, %c0_11] : memref<1x32xf32, #tpu.memory_space<vmem>>, vector<1x32xf32>
    %9 = vector.broadcast %8 : vector<1x32xf32> to vector<8x32xf32>
    %10 = arith.addf %7, %9 : vector<8x32xf32>
    %c0_12 = arith.constant 0 : index
    %c0_13 = arith.constant 0 : index
    %11 = vector.load %arg6[%c0_12, %c0_13] : memref<32x32xf32, #tpu.memory_space<vmem>>, vector<32x32xf32>
    %cst_14 = arith.constant dense<0.000000e+00> : vector<128x32xf32>
    %12 = tpu.matmul %3, %11, %cst_14 {dimension_numbers = #tpu.dot_dimension_numbers<[1], [0], [0], [1], [0, 0, 1, 1], [], []>} : vector<128x32xf32>, vector<32x32xf32>, vector<128x32xf32> -> vector<128x32xf32>
    %c0_15 = arith.constant 0 : index
    %c0_16 = arith.constant 0 : index
    %13 = vector.load %arg7[%c0_15, %c0_16] : memref<1x32xf32, #tpu.memory_space<vmem>>, vector<1x32xf32>
    %14 = vector.broadcast %13 : vector<1x32xf32> to vector<128x32xf32>
    %15 = arith.addf %12, %14 : vector<128x32xf32>
    %c0_17 = arith.constant 0 : index
    %c0_18 = arith.constant 0 : index
    %16 = vector.load %arg8[%c0_17, %c0_18] : memref<32x32xf32, #tpu.memory_space<vmem>>, vector<32x32xf32>
    %cst_19 = arith.constant dense<0.000000e+00> : vector<128x32xf32>
    %17 = tpu.matmul %5, %16, %cst_19 {dimension_numbers = #tpu.dot_dimension_numbers<[1], [0], [0], [1], [0, 0, 1, 1], [], []>} : vector<128x32xf32>, vector<32x32xf32>, vector<128x32xf32> -> vector<128x32xf32>
    %c0_20 = arith.constant 0 : index
    %c0_21 = arith.constant 0 : index
    %18 = vector.load %arg9[%c0_20, %c0_21] : memref<1x32xf32, #tpu.memory_space<vmem>>, vector<1x32xf32>
    %19 = vector.broadcast %18 : vector<1x32xf32> to vector<128x32xf32>
    %20 = arith.addf %17, %19 : vector<128x32xf32>
    %21 = tpu.iota {dimensions = array<i32: 2>} : vector<1x8x128xi32>
    %c8_i32 = arith.constant 8 : i32
    %22 = vector.broadcast %c8_i32 : i32 to vector<1x8x128xi32>
    %23 = arith.cmpi slt, %21, %22 : vector<1x8x128xi32>
    %cst_22 = arith.constant 0.000000e+00 : f32
    %24 = vector.broadcast %cst_22 : f32 to vector<1x8x128xf32>
    %cst_23 = arith.constant 0.000000e+00 : f32
    %25 = vector.broadcast %cst_23 : f32 to vector<8x32xf32>
    %26 = vector.extract_strided_slice %10 {offsets = [0, 0], sizes = [8, 8], strides = [1, 1]} : vector<8x32xf32> to vector<8x8xf32>
    %27 = vector.shape_cast %26 : vector<8x8xf32> to vector<1x8x8xf32>
    %28 = vector.extract_strided_slice %15 {offsets = [0, 0], sizes = [128, 8], strides = [1, 1]} : vector<128x32xf32> to vector<128x8xf32>
    %29 = vector.shape_cast %28 : vector<128x8xf32> to vector<1x128x8xf32>
    %30 = vector.extract_strided_slice %20 {offsets = [0, 0], sizes = [128, 8], strides = [1, 1]} : vector<128x32xf32> to vector<128x8xf32>
    %31 = vector.shape_cast %30 : vector<128x8xf32> to vector<1x128x8xf32>
    "tpu.trace_start"() <{level = 10 : i32, message = "btd,bmd->btm"}> : () -> ()
    %cst_24 = arith.constant dense<0.000000e+00> : vector<1x8x128xf32>
    %32 = tpu.matmul %27, %29, %cst_24 {dimension_numbers = #tpu.dot_dimension_numbers<[2], [2], [1], [1], [0, 0, 0, 1, 1, 1], [0], [0]>} : vector<1x8x8xf32>, vector<1x128x8xf32>, vector<1x8x128xf32> -> vector<1x8x128xf32>
    %cst_25 = arith.constant -1.000000e+30 : f32
    "tpu.trace_stop"() : () -> ()
    %33 = vector.broadcast %cst_25 : f32 to vector<1x8x128xf32>
    %34 = arith.select %23, %32, %33 : vector<1x8x128xi1>, vector<1x8x128xf32>
    %cst_26 = arith.constant dense<0xFF800000> : vector<1x8xf32>
    %35 = vector.multi_reduction <maximumf>, %34, %cst_26 [2] : vector<1x8x128xf32> to vector<1x8xf32>
    %36 = vector.shape_cast %35 : vector<1x8xf32> to vector<1x8x1xf32>
    %37 = vector.broadcast %36 : vector<1x8x1xf32> to vector<1x8x128xf32>
    %38 = arith.subf %34, %37 : vector<1x8x128xf32>
    %39 = math.exp %38 : vector<1x8x128xf32>
    %cst_27 = arith.constant dense<0.000000e+00> : vector<1x8xf32>
    %40 = vector.multi_reduction <add>, %39, %cst_27 [2] : vector<1x8x128xf32> to vector<1x8xf32>
    %41 = vector.shape_cast %40 : vector<1x8xf32> to vector<1x8x1xf32>
    %42 = tpu.reciprocal %41 : vector<1x8x1xf32> -> vector<1x8x1xf32>
    %43 = vector.broadcast %42 : vector<1x8x1xf32> to vector<1x8x128xf32>
    %44 = arith.mulf %39, %43 : vector<1x8x128xf32>
    %45 = arith.addf %24, %44 : vector<1x8x128xf32>
    "tpu.trace_start"() <{level = 10 : i32, message = "btm,bmd->btd"}> : () -> ()
    %cst_28 = arith.constant dense<0.000000e+00> : vector<1x8x8xf32>
    %46 = tpu.matmul %44, %31, %cst_28 {dimension_numbers = #tpu.dot_dimension_numbers<[2], [1], [1], [2], [0, 0, 0, 1, 1, 2], [0], [0]>} : vector<1x8x128xf32>, vector<1x128x8xf32>, vector<1x8x8xf32> -> vector<1x8x8xf32>
    "tpu.trace_stop"() : () -> ()
    %47 = vector.shape_cast %46 : vector<1x8x8xf32> to vector<8x8xf32>
    %c0_29 = arith.constant 0 : index
    %c0_30 = arith.constant 0 : index
    %c0_31 = arith.constant 0 : index
    %48 = vector.load %arg10[%c0_29, %c0_30, %c0_31] : memref<4x8x32xf32, #tpu.memory_space<vmem>>, vector<1x8x32xf32>
    %49 = vector.shape_cast %48 : vector<1x8x32xf32> to vector<8x32xf32>
    %cst_32 = arith.constant dense<0.000000e+00> : vector<8x32xf32>
    %50 = tpu.matmul %47, %49, %cst_32 {dimension_numbers = #tpu.dot_dimension_numbers<[1], [0], [0], [1], [0, 0, 1, 1], [], []>} : vector<8x8xf32>, vector<8x32xf32>, vector<8x32xf32> -> vector<8x32xf32>
    %51 = arith.addf %25, %50 : vector<8x32xf32>
    %52 = vector.extract_strided_slice %10 {offsets = [0, 8], sizes = [8, 8], strides = [1, 1]} : vector<8x32xf32> to vector<8x8xf32>
    %53 = vector.shape_cast %52 : vector<8x8xf32> to vector<1x8x8xf32>
    %54 = vector.extract_strided_slice %15 {offsets = [0, 8], sizes = [128, 8], strides = [1, 1]} : vector<128x32xf32> to vector<128x8xf32>
    %55 = vector.shape_cast %54 : vector<128x8xf32> to vector<1x128x8xf32>
    %56 = vector.extract_strided_slice %20 {offsets = [0, 8], sizes = [128, 8], strides = [1, 1]} : vector<128x32xf32> to vector<128x8xf32>
    %57 = vector.shape_cast %56 : vector<128x8xf32> to vector<1x128x8xf32>
    "tpu.trace_start"() <{level = 10 : i32, message = "btd,bmd->btm"}> : () -> ()
    %cst_33 = arith.constant dense<0.000000e+00> : vector<1x8x128xf32>
    %58 = tpu.matmul %53, %55, %cst_33 {dimension_numbers = #tpu.dot_dimension_numbers<[2], [2], [1], [1], [0, 0, 0, 1, 1, 1], [0], [0]>} : vector<1x8x8xf32>, vector<1x128x8xf32>, vector<1x8x128xf32> -> vector<1x8x128xf32>
    %cst_34 = arith.constant -1.000000e+30 : f32
    "tpu.trace_stop"() : () -> ()
    %59 = vector.broadcast %cst_34 : f32 to vector<1x8x128xf32>
    %60 = arith.select %23, %58, %59 : vector<1x8x128xi1>, vector<1x8x128xf32>
    %cst_35 = arith.constant dense<0xFF800000> : vector<1x8xf32>
    %61 = vector.multi_reduction <maximumf>, %60, %cst_35 [2] : vector<1x8x128xf32> to vector<1x8xf32>
    %62 = vector.shape_cast %61 : vector<1x8xf32> to vector<1x8x1xf32>
    %63 = vector.broadcast %62 : vector<1x8x1xf32> to vector<1x8x128xf32>
    %64 = arith.subf %60, %63 : vector<1x8x128xf32>
    %65 = math.exp %64 : vector<1x8x128xf32>
    %cst_36 = arith.constant dense<0.000000e+00> : vector<1x8xf32>
    %66 = vector.multi_reduction <add>, %65, %cst_36 [2] : vector<1x8x128xf32> to vector<1x8xf32>
    %67 = vector.shape_cast %66 : vector<1x8xf32> to vector<1x8x1xf32>
    %68 = tpu.reciprocal %67 : vector<1x8x1xf32> -> vector<1x8x1xf32>
    %69 = vector.broadcast %68 : vector<1x8x1xf32> to vector<1x8x128xf32>
    %70 = arith.mulf %65, %69 : vector<1x8x128xf32>
    %71 = arith.addf %45, %70 : vector<1x8x128xf32>
    "tpu.trace_start"() <{level = 10 : i32, message = "btm,bmd->btd"}> : () -> ()
    %cst_37 = arith.constant dense<0.000000e+00> : vector<1x8x8xf32>
    %72 = tpu.matmul %70, %57, %cst_37 {dimension_numbers = #tpu.dot_dimension_numbers<[2], [1], [1], [2], [0, 0, 0, 1, 1, 2], [0], [0]>} : vector<1x8x128xf32>, vector<1x128x8xf32>, vector<1x8x8xf32> -> vector<1x8x8xf32>
    "tpu.trace_stop"() : () -> ()
    %73 = vector.shape_cast %72 : vector<1x8x8xf32> to vector<8x8xf32>
    %c1 = arith.constant 1 : index
    %c0_38 = arith.constant 0 : index
    %c0_39 = arith.constant 0 : index
    %74 = vector.load %arg10[%c1, %c0_38, %c0_39] : memref<4x8x32xf32, #tpu.memory_space<vmem>>, vector<1x8x32xf32>
    %75 = vector.shape_cast %74 : vector<1x8x32xf32> to vector<8x32xf32>
    %cst_40 = arith.constant dense<0.000000e+00> : vector<8x32xf32>
    %76 = tpu.matmul %73, %75, %cst_40 {dimension_numbers = #tpu.dot_dimension_numbers<[1], [0], [0], [1], [0, 0, 1, 1], [], []>} : vector<8x8xf32>, vector<8x32xf32>, vector<8x32xf32> -> vector<8x32xf32>
    %77 = arith.addf %51, %76 : vector<8x32xf32>
    %78 = vector.extract_strided_slice %10 {offsets = [0, 16], sizes = [8, 8], strides = [1, 1]} : vector<8x32xf32> to vector<8x8xf32>
    %79 = vector.shape_cast %78 : vector<8x8xf32> to vector<1x8x8xf32>
    %80 = vector.extract_strided_slice %15 {offsets = [0, 16], sizes = [128, 8], strides = [1, 1]} : vector<128x32xf32> to vector<128x8xf32>
    %81 = vector.shape_cast %80 : vector<128x8xf32> to vector<1x128x8xf32>
    %82 = vector.extract_strided_slice %20 {offsets = [0, 16], sizes = [128, 8], strides = [1, 1]} : vector<128x32xf32> to vector<128x8xf32>
    %83 = vector.shape_cast %82 : vector<128x8xf32> to vector<1x128x8xf32>
    "tpu.trace_start"() <{level = 10 : i32, message = "btd,bmd->btm"}> : () -> ()
    %cst_41 = arith.constant dense<0.000000e+00> : vector<1x8x128xf32>
    %84 = tpu.matmul %79, %81, %cst_41 {dimension_numbers = #tpu.dot_dimension_numbers<[2], [2], [1], [1], [0, 0, 0, 1, 1, 1], [0], [0]>} : vector<1x8x8xf32>, vector<1x128x8xf32>, vector<1x8x128xf32> -> vector<1x8x128xf32>
    %cst_42 = arith.constant -1.000000e+30 : f32
    "tpu.trace_stop"() : () -> ()
    %85 = vector.broadcast %cst_42 : f32 to vector<1x8x128xf32>
    %86 = arith.select %23, %84, %85 : vector<1x8x128xi1>, vector<1x8x128xf32>
    %cst_43 = arith.constant dense<0xFF800000> : vector<1x8xf32>
    %87 = vector.multi_reduction <maximumf>, %86, %cst_43 [2] : vector<1x8x128xf32> to vector<1x8xf32>
    %88 = vector.shape_cast %87 : vector<1x8xf32> to vector<1x8x1xf32>
    %89 = vector.broadcast %88 : vector<1x8x1xf32> to vector<1x8x128xf32>
    %90 = arith.subf %86, %89 : vector<1x8x128xf32>
    %91 = math.exp %90 : vector<1x8x128xf32>
    %cst_44 = arith.constant dense<0.000000e+00> : vector<1x8xf32>
    %92 = vector.multi_reduction <add>, %91, %cst_44 [2] : vector<1x8x128xf32> to vector<1x8xf32>
    %93 = vector.shape_cast %92 : vector<1x8xf32> to vector<1x8x1xf32>
    %94 = tpu.reciprocal %93 : vector<1x8x1xf32> -> vector<1x8x1xf32>
    %95 = vector.broadcast %94 : vector<1x8x1xf32> to vector<1x8x128xf32>
    %96 = arith.mulf %91, %95 : vector<1x8x128xf32>
    %97 = arith.addf %71, %96 : vector<1x8x128xf32>
    "tpu.trace_start"() <{level = 10 : i32, message = "btm,bmd->btd"}> : () -> ()
    %cst_45 = arith.constant dense<0.000000e+00> : vector<1x8x8xf32>
    %98 = tpu.matmul %96, %83, %cst_45 {dimension_numbers = #tpu.dot_dimension_numbers<[2], [1], [1], [2], [0, 0, 0, 1, 1, 2], [0], [0]>} : vector<1x8x128xf32>, vector<1x128x8xf32>, vector<1x8x8xf32> -> vector<1x8x8xf32>
    "tpu.trace_stop"() : () -> ()
    %99 = vector.shape_cast %98 : vector<1x8x8xf32> to vector<8x8xf32>
    %c2 = arith.constant 2 : index
    %c0_46 = arith.constant 0 : index
    %c0_47 = arith.constant 0 : index
    %100 = vector.load %arg10[%c2, %c0_46, %c0_47] : memref<4x8x32xf32, #tpu.memory_space<vmem>>, vector<1x8x32xf32>
    %101 = vector.shape_cast %100 : vector<1x8x32xf32> to vector<8x32xf32>
    %cst_48 = arith.constant dense<0.000000e+00> : vector<8x32xf32>
    %102 = tpu.matmul %99, %101, %cst_48 {dimension_numbers = #tpu.dot_dimension_numbers<[1], [0], [0], [1], [0, 0, 1, 1], [], []>} : vector<8x8xf32>, vector<8x32xf32>, vector<8x32xf32> -> vector<8x32xf32>
    %103 = arith.addf %77, %102 : vector<8x32xf32>
    %104 = vector.extract_strided_slice %10 {offsets = [0, 24], sizes = [8, 8], strides = [1, 1]} : vector<8x32xf32> to vector<8x8xf32>
    %105 = vector.shape_cast %104 : vector<8x8xf32> to vector<1x8x8xf32>
    %106 = vector.extract_strided_slice %15 {offsets = [0, 24], sizes = [128, 8], strides = [1, 1]} : vector<128x32xf32> to vector<128x8xf32>
    %107 = vector.shape_cast %106 : vector<128x8xf32> to vector<1x128x8xf32>
    %108 = vector.extract_strided_slice %20 {offsets = [0, 24], sizes = [128, 8], strides = [1, 1]} : vector<128x32xf32> to vector<128x8xf32>
    %109 = vector.shape_cast %108 : vector<128x8xf32> to vector<1x128x8xf32>
    "tpu.trace_start"() <{level = 10 : i32, message = "btd,bmd->btm"}> : () -> ()
    %cst_49 = arith.constant dense<0.000000e+00> : vector<1x8x128xf32>
    %110 = tpu.matmul %105, %107, %cst_49 {dimension_numbers = #tpu.dot_dimension_numbers<[2], [2], [1], [1], [0, 0, 0, 1, 1, 1], [0], [0]>} : vector<1x8x8xf32>, vector<1x128x8xf32>, vector<1x8x128xf32> -> vector<1x8x128xf32>
    %cst_50 = arith.constant -1.000000e+30 : f32
    "tpu.trace_stop"() : () -> ()
    %111 = vector.broadcast %cst_50 : f32 to vector<1x8x128xf32>
    %112 = arith.select %23, %110, %111 : vector<1x8x128xi1>, vector<1x8x128xf32>
    %cst_51 = arith.constant dense<0xFF800000> : vector<1x8xf32>
    %113 = vector.multi_reduction <maximumf>, %112, %cst_51 [2] : vector<1x8x128xf32> to vector<1x8xf32>
    %114 = vector.shape_cast %113 : vector<1x8xf32> to vector<1x8x1xf32>
    %115 = vector.broadcast %114 : vector<1x8x1xf32> to vector<1x8x128xf32>
    %116 = arith.subf %112, %115 : vector<1x8x128xf32>
    %117 = math.exp %116 : vector<1x8x128xf32>
    %cst_52 = arith.constant dense<0.000000e+00> : vector<1x8xf32>
    %118 = vector.multi_reduction <add>, %117, %cst_52 [2] : vector<1x8x128xf32> to vector<1x8xf32>
    %119 = vector.shape_cast %118 : vector<1x8xf32> to vector<1x8x1xf32>
    %120 = tpu.reciprocal %119 : vector<1x8x1xf32> -> vector<1x8x1xf32>
    %121 = vector.broadcast %120 : vector<1x8x1xf32> to vector<1x8x128xf32>
    %122 = arith.mulf %117, %121 : vector<1x8x128xf32>
    %123 = arith.addf %97, %122 : vector<1x8x128xf32>
    "tpu.trace_start"() <{level = 10 : i32, message = "btm,bmd->btd"}> : () -> ()
    %cst_53 = arith.constant dense<0.000000e+00> : vector<1x8x8xf32>
    %124 = tpu.matmul %122, %109, %cst_53 {dimension_numbers = #tpu.dot_dimension_numbers<[2], [1], [1], [2], [0, 0, 0, 1, 1, 2], [0], [0]>} : vector<1x8x128xf32>, vector<1x128x8xf32>, vector<1x8x8xf32> -> vector<1x8x8xf32>
    "tpu.trace_stop"() : () -> ()
    %125 = vector.shape_cast %124 : vector<1x8x8xf32> to vector<8x8xf32>
    %c3 = arith.constant 3 : index
    %c0_54 = arith.constant 0 : index
    %c0_55 = arith.constant 0 : index
    %126 = vector.load %arg10[%c3, %c0_54, %c0_55] : memref<4x8x32xf32, #tpu.memory_space<vmem>>, vector<1x8x32xf32>
    %127 = vector.shape_cast %126 : vector<1x8x32xf32> to vector<8x32xf32>
    %cst_56 = arith.constant dense<0.000000e+00> : vector<8x32xf32>
    %128 = tpu.matmul %125, %127, %cst_56 {dimension_numbers = #tpu.dot_dimension_numbers<[1], [0], [0], [1], [0, 0, 1, 1], [], []>} : vector<8x8xf32>, vector<8x32xf32>, vector<8x32xf32> -> vector<8x32xf32>
    %129 = arith.addf %103, %128 : vector<8x32xf32>
    %c0_57 = arith.constant 0 : index
    %c0_58 = arith.constant 0 : index
    %130 = vector.load %arg11[%c0_57, %c0_58] : memref<1x32xf32, #tpu.memory_space<vmem>>, vector<1x32xf32>
    %131 = vector.broadcast %130 : vector<1x32xf32> to vector<8x32xf32>
    %132 = arith.addf %129, %131 : vector<8x32xf32>
    %133 = vector.shape_cast %132 : vector<8x32xf32> to vector<1x8x32xf32>
    %c0_59 = arith.constant 0 : index
    %c0_60 = arith.constant 0 : index
    %c0_61 = arith.constant 0 : index
    %134 = vector.load %arg12[%c0_59, %c0_60, %c0_61] : memref<1x8x32xf32, #tpu.memory_space<vmem>>, vector<1x8x32xf32>
    tpu.vector_store %arg12[%c0_59, %c0_60, %c0_61], %133 {strides = array<i32>} : memref<1x8x32xf32, #tpu.memory_space<vmem>>, vector<1x8x32xf32>,
    %cst_62 = arith.constant 2.500000e-01 : f32
    %135 = vector.broadcast %cst_62 : f32 to vector<1x8x128xf32>
    %136 = arith.mulf %123, %135 : vector<1x8x128xf32>
    %c0_63 = arith.constant 0 : index
    %c0_64 = arith.constant 0 : index
    %c0_65 = arith.constant 0 : index
    %137 = vector.load %arg13[%c0_63, %c0_64, %c0_65] : memref<1x8x128xf32, #tpu.memory_space<vmem>>, vector<1x8x128xf32>
    tpu.vector_store %arg13[%c0_63, %c0_64, %c0_65], %136 {strides = array<i32>} : memref<1x8x128xf32, #tpu.memory_space<vmem>>, vector<1x8x128xf32>,
    return
  }
  func.func @transform_0(%arg0: i32) -> (i32, i32, i32) {
    %c0_i32 = arith.constant 0 : i32
    %c0_i32_0 = arith.constant 0 : i32
    %c0_i32_1 = arith.constant 0 : i32
    return %arg0, %c0_i32, %c0_i32_0 : i32, i32, i32
  }
  func.func @transform_1(%arg0: i32) -> (i32, i32, i32) {
    %c0_i32 = arith.constant 0 : i32
    %c0_i32_0 = arith.constant 0 : i32
    %c0_i32_1 = arith.constant 0 : i32
    return %arg0, %c0_i32, %c0_i32_0 : i32, i32, i32
  }
  func.func @transform_2(%arg0: i32) -> (i32, i32, i32) {
    %c0_i32 = arith.constant 0 : i32
    %c0_i32_0 = arith.constant 0 : i32
    %c0_i32_1 = arith.constant 0 : i32
    return %arg0, %c0_i32, %c0_i32_0 : i32, i32, i32
  }
  func.func @transform_3(%arg0: i32) -> (i32, i32) {
    %c0_i32 = arith.constant 0 : i32
    %c0_i32_0 = arith.constant 0 : i32
    %c0_i32_1 = arith.constant 0 : i32
    return %c0_i32, %c0_i32_0 : i32, i32
  }
  func.func @transform_4(%arg0: i32) -> (i32, i32) {
    %c0_i32 = arith.constant 0 : i32
    %c0_i32_0 = arith.constant 0 : i32
    %c0_i32_1 = arith.constant 0 : i32
    return %c0_i32, %c0_i32_0 : i32, i32
  }
  func.func @transform_5(%arg0: i32) -> (i32, i32) {
    %c0_i32 = arith.constant 0 : i32
    %c0_i32_0 = arith.constant 0 : i32
    %c0_i32_1 = arith.constant 0 : i32
    return %c0_i32, %c0_i32_0 : i32, i32
  }
  func.func @transform_6(%arg0: i32) -> (i32, i32) {
    %c0_i32 = arith.constant 0 : i32
    %c0_i32_0 = arith.constant 0 : i32
    %c0_i32_1 = arith.constant 0 : i32
    return %c0_i32, %c0_i32_0 : i32, i32
  }
  func.func @transform_7(%arg0: i32) -> (i32, i32) {
    %c0_i32 = arith.constant 0 : i32
    %c0_i32_0 = arith.constant 0 : i32
    %c0_i32_1 = arith.constant 0 : i32
    return %c0_i32, %c0_i32_0 : i32, i32
  }
  func.func @transform_8(%arg0: i32) -> (i32, i32) {
    %c0_i32 = arith.constant 0 : i32
    %c0_i32_0 = arith.constant 0 : i32
    %c0_i32_1 = arith.constant 0 : i32
    return %c0_i32, %c0_i32_0 : i32, i32
  }
  func.func @transform_9(%arg0: i32) -> (i32, i32, i32) {
    %c0_i32 = arith.constant 0 : i32
    %c0_i32_0 = arith.constant 0 : i32
    %c0_i32_1 = arith.constant 0 : i32
    %c0_i32_2 = arith.constant 0 : i32
    return %c0_i32, %c0_i32_0, %c0_i32_1 : i32, i32, i32
  }
  func.func @transform_10(%arg0: i32) -> (i32, i32) {
    %c0_i32 = arith.constant 0 : i32
    %c0_i32_0 = arith.constant 0 : i32
    %c0_i32_1 = arith.constant 0 : i32
    return %c0_i32, %c0_i32_0 : i32, i32
  }
  func.func @transform_11(%arg0: i32) -> (i32, i32, i32) {
    %c0_i32 = arith.constant 0 : i32
    %c0_i32_0 = arith.constant 0 : i32
    %c0_i32_1 = arith.constant 0 : i32
    return %arg0, %c0_i32, %c0_i32_0 : i32, i32, i32
  }
  func.func @transform_12(%arg0: i32) -> (i32, i32, i32) {
    %c0_i32 = arith.constant 0 : i32
    %c0_i32_0 = arith.constant 0 : i32
    %c0_i32_1 = arith.constant 0 : i32
    return %arg0, %c0_i32, %c0_i32_0 : i32, i32, i32
  }
}

</mosaic_0001>

<llo_original>
// kernel: tpu_custom_call.1
$region0: #{tpu_custom_call.1}
  #allocation0 [shape = 'u32[]', space=smem, size = 0x4, offset = 0x4, fixed_abs, tag = 'smem constant byte address 0x4 - core index']
  #allocation1 [shape = 'u32[144,128]{1,0:T(1,128)}', space=vmem, size = 0x12000, scoped, tag = 'internal scratch']
  %s0 = inlined_call_operand.vmem [shape: f32[2,8,32], index: 0, kind: input, shape index: {}]
  %s1 = inlined_call_operand.vmem [shape: f32[2,128,32], index: 1, kind: input, shape index: {}]
  %s2 = inlined_call_operand.vmem [shape: f32[2,128,32], index: 2, kind: input, shape index: {}]
  %s3 = inlined_call_operand.vmem [shape: f32[32,32], index: 3, kind: input, shape index: {}]
  %s4 = inlined_call_operand.vmem [shape: f32[1,32], index: 4, kind: input, shape index: {}]
  %s5 = inlined_call_operand.vmem [shape: f32[32,32], index: 5, kind: input, shape index: {}]
  %s6 = inlined_call_operand.vmem [shape: f32[1,32], index: 6, kind: input, shape index: {}]
  %s7 = inlined_call_operand.vmem [shape: f32[32,32], index: 7, kind: input, shape index: {}]
  %s8 = inlined_call_operand.vmem [shape: f32[1,32], index: 8, kind: input, shape index: {}]
  %s9 = inlined_call_operand.vmem [shape: f32[4,8,32], index: 9, kind: input, shape index: {}]
  %s10 = inlined_call_operand.vmem [shape: f32[1,32], index: 10, kind: input, shape index: {}]
  %s11 = inlined_call_operand.hbm [shape: f32[2,8,32], index: 11, kind: output, shape index: {0}]
  %s12 = inlined_call_operand.hbm [shape: f32[2,8,128], index: 12, kind: output, shape index: {1}]
  %13 = xla_tuple %s11, %s12
  %s14 = sld [smem:[#allocation0]]
  $region85: #{tpu_custom_call.1} parent=0
    _
  %s16 = ssub.s32 1, %s14
  %s17 = scalar_select 0, %s16, %s14
  $region1: #{tpu_custom_call.1} parent=0
    #allocation2 [shape = 'u8[8192]{0}', space=vmem, size = 0x2000, scoped, tag = 'output window, operand 0']
    #allocation3 [shape = 's32[2]{0}', space=sflag, size = 0x8, scoped, tag = 'scoped memory for tpu_custom_call.1']
    #allocation4 [shape = 'u8[8192]{0}', space=vmem, size = 0x2000, scoped, tag = 'output window, operand 1']
    #allocation5 [shape = 's32[2]{0}', space=sflag, size = 0x8, scoped, tag = 'scoped memory for tpu_custom_call.1']
    %18 = vsyncpa [#allocation3], 0
    %s19 = scalar_lea.sflag [#allocation3], 1
    %20 = vsyncpa %s19, 0
    %21 = vsyncpa [#allocation5], 0
    %s22 = scalar_lea.sflag [#allocation5], 1
    %23 = vsyncpa %s22, 0
    loop: start=0, step=1, limit=4
    $region2: #{tpu_custom_call.1} parent=1 // loop_pre_header
      _
    $region3: #{tpu_custom_call.1} parent=1 // loop_header
      %s25 = sphi 0, %s29
      %p26 = scmp.ge.s32.totalorder %s25, 4
      %s35 = sphi 0, %s37
      %s38 = sphi 0, %s35
      %s39 = sphi 0, %s38
      %s55 = sphi 0, %s39
      %s61 = sphi 0, %s63
      %s64 = sphi 0, %s61
      %s65 = sphi 0, %s64
      %s81 = sphi 0, %s65
      %s87 = sphi 0, %s89
      %s90 = sphi 0, %s87
      %s91 = sphi 0, %s90
      %s107 = sphi 0, %s91
      %s111 = sphi 0, %s111
      %s113 = sphi 0, %s111
      %s114 = sphi 0, %s113
      %s128 = sphi 0, %s114
      %s132 = sphi 0, %s132
      %s134 = sphi 0, %s132
      %s135 = sphi 0, %s134
      %s149 = sphi 0, %s135
      %s153 = sphi 0, %s153
      %s155 = sphi 0, %s153
      %s156 = sphi 0, %s155
      %s170 = sphi 0, %s156
      %s174 = sphi 0, %s174
      %s176 = sphi 0, %s174
      %s177 = sphi 0, %s176
      %s191 = sphi 0, %s177
      %s195 = sphi 0, %s195
      %s197 = sphi 0, %s195
      %s198 = sphi 0, %s197
      %s212 = sphi 0, %s198
      %s216 = sphi 0, %s216
      %s218 = sphi 0, %s216
      %s219 = sphi 0, %s218
      %s233 = sphi 0, %s219
      %s237 = sphi 0, %s237
      %s239 = sphi 0, %s237
      %s240 = sphi 0, %s239
      %s254 = sphi 0, %s240
      %s258 = sphi 0, %s258
      %s260 = sphi 0, %s258
      %s261 = sphi 0, %s260
      %s275 = sphi 0, %s261
      %s281 = sphi 0, %s283
      %s284 = sphi 0, %s281
      %s285 = sphi 0, %s284
      %s301 = sphi 0, %s285
      %s307 = sphi 0, %s309
      %s310 = sphi 0, %s307
      %s311 = sphi 0, %s310
      %s327 = sphi 0, %s311
    $region4: #{tpu_custom_call.1} parent=1 // loop_header_branch
      %28 = sbr.rel (%p26) target = $region8
    $region5: #{tpu_custom_call.1} parent=1 // loop_body
      %s30 = ssub.s32 %s25, 1
      %s31 = ssub.s32 %s25, 2
      %s32 = sadd.s32 %s25, 1
      %s33 = ssub.s32 %s25, %s32
      %p34 = scmp.eq.s32.totalorder %s33, 0
      %s36 = sadd.s32 %s35, 1
      %s37 = scalar_select %p34, %s35, %s36
      %p40 = pneg %p34
      %p41 = scmp.eq.s32.totalorder %s25, 1
      %p42 = por %p40, %p41
      %p43 = scmp.ne.s32.totalorder %s35, %s38
      %p44 = scmp.eq.s32.totalorder %s25, 0
      %p45 = por %p43, %p44
      %p46 = scmp.ne.s32.totalorder %s35, %s38
      %p47 = scmp.eq.s32.totalorder %s30, 1
      %p48 = por %p46, %p47
      %p49 = scmp.ne.s32.totalorder %s38, %s39
      %p50 = scmp.eq.s32.totalorder %s30, 0
      %p51 = por %p49, %p50
      %p52 = scmp.ne.s32.totalorder %s38, %s39
      %p53 = scmp.eq.s32.totalorder %s31, 1
      %p54 = por %p52, %p53
      %p56 = scmp.ne.s32.totalorder %s39, %s55
      %p57 = scmp.eq.s32.totalorder %s31, 0
      %p58 = por %p56, %p57
      %s59 = ssub.s32 %s25, %s32
      %p60 = scmp.eq.s32.totalorder %s59, 0
      %s62 = sadd.s32 %s61, 1
      %s63 = scalar_select %p60, %s61, %s62
      %p66 = pneg %p60
      %p67 = scmp.eq.s32.totalorder %s25, 1
      %p68 = por %p66, %p67
      %p69 = scmp.ne.s32.totalorder %s61, %s64
      %p70 = scmp.eq.s32.totalorder %s25, 0
      %p71 = por %p69, %p70
      %p72 = scmp.ne.s32.totalorder %s61, %s64
      %p73 = scmp.eq.s32.totalorder %s30, 1
      %p74 = por %p72, %p73
      %p75 = scmp.ne.s32.totalorder %s64, %s65
      %p76 = scmp.eq.s32.totalorder %s30, 0
      %p77 = por %p75, %p76
      %p78 = scmp.ne.s32.totalorder %s64, %s65
      %p79 = scmp.eq.s32.totalorder %s31, 1
      %p80 = por %p78, %p79
      %p82 = scmp.ne.s32.totalorder %s65, %s81
      %p83 = scmp.eq.s32.totalorder %s31, 0
      %p84 = por %p82, %p83
      %s85 = ssub.s32 %s25, %s32
      %p86 = scmp.eq.s32.totalorder %s85, 0
      %s88 = sadd.s32 %s87, 1
      %s89 = scalar_select %p86, %s87, %s88
      %p92 = pneg %p86
      %p93 = scmp.eq.s32.totalorder %s25, 1
      %p94 = por %p92, %p93
      %p95 = scmp.ne.s32.totalorder %s87, %s90
      %p96 = scmp.eq.s32.totalorder %s25, 0
      %p97 = por %p95, %p96
      %p98 = scmp.ne.s32.totalorder %s87, %s90
      %p99 = scmp.eq.s32.totalorder %s30, 1
      %p100 = por %p98, %p99
      %p101 = scmp.ne.s32.totalorder %s90, %s91
      %p102 = scmp.eq.s32.totalorder %s30, 0
      %p103 = por %p101, %p102
      %p104 = scmp.ne.s32.totalorder %s90, %s91
      %p105 = scmp.eq.s32.totalorder %s31, 1
      %p106 = por %p104, %p105
      %p108 = scmp.ne.s32.totalorder %s91, %s107
      %p109 = scmp.eq.s32.totalorder %s31, 0
      %p110 = por %p108, %p109
      %s112 = sadd.s32 %s111, 1
      %p115 = scmp.eq.s32.totalorder %s25, 1
      %p116 = scmp.ne.s32.totalorder %s111, %s113
      %p117 = scmp.eq.s32.totalorder %s25, 0
      %p118 = por %p116, %p117
      %p119 = scmp.ne.s32.totalorder %s111, %s113
      %p120 = scmp.eq.s32.totalorder %s30, 1
      %p121 = por %p119, %p120
      %p122 = scmp.ne.s32.totalorder %s113, %s114
      %p123 = scmp.eq.s32.totalorder %s30, 0
      %p124 = por %p122, %p123
      %p125 = scmp.ne.s32.totalorder %s113, %s114
      %p126 = scmp.eq.s32.totalorder %s31, 1
      %p127 = por %p125, %p126
      %p129 = scmp.ne.s32.totalorder %s114, %s128
      %p130 = scmp.eq.s32.totalorder %s31, 0
      %p131 = por %p129, %p130
      %s133 = sadd.s32 %s132, 1
      %p136 = scmp.eq.s32.totalorder %s25, 1
      %p137 = scmp.ne.s32.totalorder %s132, %s134
      %p138 = scmp.eq.s32.totalorder %s25, 0
      %p139 = por %p137, %p138
      %p140 = scmp.ne.s32.totalorder %s132, %s134
      %p141 = scmp.eq.s32.totalorder %s30, 1
      %p142 = por %p140, %p141
      %p143 = scmp.ne.s32.totalorder %s134, %s135
      %p144 = scmp.eq.s32.totalorder %s30, 0
      %p145 = por %p143, %p144
      %p146 = scmp.ne.s32.totalorder %s134, %s135
      %p147 = scmp.eq.s32.totalorder %s31, 1
      %p148 = por %p146, %p147
      %p150 = scmp.ne.s32.totalorder %s135, %s149
      %p151 = scmp.eq.s32.totalorder %s31, 0
      %p152 = por %p150, %p151
      %s154 = sadd.s32 %s153, 1
      %p157 = scmp.eq.s32.totalorder %s25, 1
      %p158 = scmp.ne.s32.totalorder %s153, %s155
      %p159 = scmp.eq.s32.totalorder %s25, 0
      %p160 = por %p158, %p159
      %p161 = scmp.ne.s32.totalorder %s153, %s155
      %p162 = scmp.eq.s32.totalorder %s30, 1
      %p163 = por %p161, %p162
      %p164 = scmp.ne.s32.totalorder %s155, %s156
      %p165 = scmp.eq.s32.totalorder %s30, 0
      %p166 = por %p164, %p165
      %p167 = scmp.ne.s32.totalorder %s155, %s156
      %p168 = scmp.eq.s32.totalorder %s31, 1
      %p169 = por %p167, %p168
      %p171 = scmp.ne.s32.totalorder %s156, %s170
      %p172 = scmp.eq.s32.totalorder %s31, 0
      %p173 = por %p171, %p172
      %s175 = sadd.s32 %s174, 1
      %p178 = scmp.eq.s32.totalorder %s25, 1
      %p179 = scmp.ne.s32.totalorder %s174, %s176
      %p180 = scmp.eq.s32.totalorder %s25, 0
      %p181 = por %p179, %p180
      %p182 = scmp.ne.s32.totalorder %s174, %s176
      %p183 = scmp.eq.s32.totalorder %s30, 1
      %p184 = por %p182, %p183
      %p185 = scmp.ne.s32.totalorder %s176, %s177
      %p186 = scmp.eq.s32.totalorder %s30, 0
      %p187 = por %p185, %p186
      %p188 = scmp.ne.s32.totalorder %s176, %s177
      %p189 = scmp.eq.s32.totalorder %s31, 1
      %p190 = por %p188, %p189
      %p192 = scmp.ne.s32.totalorder %s177, %s191
      %p193 = scmp.eq.s32.totalorder %s31, 0
      %p194 = por %p192, %p193
      %s196 = sadd.s32 %s195, 1
      %p199 = scmp.eq.s32.totalorder %s25, 1
      %p200 = scmp.ne.s32.totalorder %s195, %s197
      %p201 = scmp.eq.s32.totalorder %s25, 0
      %p202 = por %p200, %p201
      %p203 = scmp.ne.s32.totalorder %s195, %s197
      %p204 = scmp.eq.s32.totalorder %s30, 1
      %p205 = por %p203, %p204
      %p206 = scmp.ne.s32.totalorder %s197, %s198
      %p207 = scmp.eq.s32.totalorder %s30, 0
      %p208 = por %p206, %p207
      %p209 = scmp.ne.s32.totalorder %s197, %s198
      %p210 = scmp.eq.s32.totalorder %s31, 1
      %p211 = por %p209, %p210
      %p213 = scmp.ne.s32.totalorder %s198, %s212
      %p214 = scmp.eq.s32.totalorder %s31, 0
      %p215 = por %p213, %p214
      %s217 = sadd.s32 %s216, 1
      %p220 = scmp.eq.s32.totalorder %s25, 1
      %p221 = scmp.ne.s32.totalorder %s216, %s218
      %p222 = scmp.eq.s32.totalorder %s25, 0
      %p223 = por %p221, %p222
      %p224 = scmp.ne.s32.totalorder %s216, %s218
      %p225 = scmp.eq.s32.totalorder %s30, 1
      %p226 = por %p224, %p225
      %p227 = scmp.ne.s32.totalorder %s218, %s219
      %p228 = scmp.eq.s32.totalorder %s30, 0
      %p229 = por %p227, %p228
      %p230 = scmp.ne.s32.totalorder %s218, %s219
      %p231 = scmp.eq.s32.totalorder %s31, 1
      %p232 = por %p230, %p231
      %p234 = scmp.ne.s32.totalorder %s219, %s233
      %p235 = scmp.eq.s32.totalorder %s31, 0
      %p236 = por %p234, %p235
      %s238 = sadd.s32 %s237, 1
      %p241 = scmp.eq.s32.totalorder %s25, 1
      %p242 = scmp.ne.s32.totalorder %s237, %s239
      %p243 = scmp.eq.s32.totalorder %s25, 0
      %p244 = por %p242, %p243
      %p245 = scmp.ne.s32.totalorder %s237, %s239
      %p246 = scmp.eq.s32.totalorder %s30, 1
      %p247 = por %p245, %p246
      %p248 = scmp.ne.s32.totalorder %s239, %s240
      %p249 = scmp.eq.s32.totalorder %s30, 0
      %p250 = por %p248, %p249
      %p251 = scmp.ne.s32.totalorder %s239, %s240
      %p252 = scmp.eq.s32.totalorder %s31, 1
      %p253 = por %p251, %p252
      %p255 = scmp.ne.s32.totalorder %s240, %s254
      %p256 = scmp.eq.s32.totalorder %s31, 0
      %p257 = por %p255, %p256
      %s259 = sadd.s32 %s258, 1
      %p262 = scmp.eq.s32.totalorder %s25, 1
      %p263 = scmp.ne.s32.totalorder %s258, %s260
      %p264 = scmp.eq.s32.totalorder %s25, 0
      %p265 = por %p263, %p264
      %p266 = scmp.ne.s32.totalorder %s258, %s260
      %p267 = scmp.eq.s32.totalorder %s30, 1
      %p268 = por %p266, %p267
      %p269 = scmp.ne.s32.totalorder %s260, %s261
      %p270 = scmp.eq.s32.totalorder %s30, 0
      %p271 = por %p269, %p270
      %p272 = scmp.ne.s32.totalorder %s260, %s261
      %p273 = scmp.eq.s32.totalorder %s31, 1
      %p274 = por %p272, %p273
      %p276 = scmp.ne.s32.totalorder %s261, %s275
      %p277 = scmp.eq.s32.totalorder %s31, 0
      %p278 = por %p276, %p277
      %s279 = ssub.s32 %s25, %s32
      %p280 = scmp.eq.s32.totalorder %s279, 0
      %s282 = sadd.s32 %s281, 1
      %s283 = scalar_select %p280, %s281, %s282
      %p286 = pneg %p280
      %p287 = scmp.eq.s32.totalorder %s25, 1
      %p288 = por %p286, %p287
      %p289 = scmp.ne.s32.totalorder %s281, %s284
      %p290 = scmp.eq.s32.totalorder %s25, 0
      %p291 = por %p289, %p290
      %p292 = scmp.ne.s32.totalorder %s281, %s284
      %p293 = scmp.eq.s32.totalorder %s30, 1
      %p294 = por %p292, %p293
      %p295 = scmp.ne.s32.totalorder %s284, %s285
      %p296 = scmp.eq.s32.totalorder %s30, 0
      %p297 = por %p295, %p296
      %p298 = scmp.ne.s32.totalorder %s284, %s285
      %p299 = scmp.eq.s32.totalorder %s31, 1
      %p300 = por %p298, %p299
      %p302 = scmp.ne.s32.totalorder %s285, %s301
      %p303 = scmp.eq.s32.totalorder %s31, 0
      %p304 = por %p302, %p303
      %s305 = ssub.s32 %s25, %s32
      %p306 = scmp.eq.s32.totalorder %s305, 0
      %s308 = sadd.s32 %s307, 1
      %s309 = scalar_select %p306, %s307, %s308
      %p312 = pneg %p306
      %p313 = scmp.eq.s32.totalorder %s25, 1
      %p314 = por %p312, %p313
      %p315 = scmp.ne.s32.totalorder %s307, %s310
      %p316 = scmp.eq.s32.totalorder %s25, 0
      %p317 = por %p315, %p316
      %p318 = scmp.ne.s32.totalorder %s307, %s310
      %p319 = scmp.eq.s32.totalorder %s30, 1
      %p320 = por %p318, %p319
      %p321 = scmp.ne.s32.totalorder %s310, %s311
      %p322 = scmp.eq.s32.totalorder %s30, 0
      %p323 = por %p321, %p322
      %p324 = scmp.ne.s32.totalorder %s310, %s311
      %p325 = scmp.eq.s32.totalorder %s31, 1
      %p326 = por %p324, %p325
      %p328 = scmp.ne.s32.totalorder %s311, %s327
      %p329 = scmp.eq.s32.totalorder %s31, 0
      %p330 = por %p328, %p329
      %p331 = scmp.le.s32.totalorder 1, %s25
      %p332 = scmp.lt.s32.totalorder %s25, 3
      %p333 = pnand %p331, %p332
      %p334 = pneg %p333
      // Predicated region
      $region9: #{tpu_custom_call.1} parent=5 // pred_check
        _
      $region10: #{tpu_custom_call.1} parent=5 // pred_check_branch
        %336 = sbr.rel (%p333) target = $region12
      $region11: #{tpu_custom_call.1} parent=5 // pred_region
        %s337 = ssub.s32 %s25, 1
        // Predicated region
        $region13: #{tpu_custom_call.1} parent=11 // pred_check
          %p338 = pneg %p124
        $region14: #{tpu_custom_call.1} parent=11 // pred_check_branch
          %340 = sbr.rel (%p338) target = $region16
        $region15: #{tpu_custom_call.1} parent=11 // pred_region
          _
        $region16: #{tpu_custom_call.1} parent=11 // pred_fallthru
          _
        // Predicated region
        $region17: #{tpu_custom_call.1} parent=11 // pred_check
          %p341 = pneg %p145
        $region18: #{tpu_custom_call.1} parent=11 // pred_check_branch
          %343 = sbr.rel (%p341) target = $region20
        $region19: #{tpu_custom_call.1} parent=11 // pred_region
          _
        $region20: #{tpu_custom_call.1} parent=11 // pred_fallthru
          _
        // Predicated region
        $region21: #{tpu_custom_call.1} parent=11 // pred_check
          %p344 = pneg %p166
        $region22: #{tpu_custom_call.1} parent=11 // pred_check_branch
          %346 = sbr.rel (%p344) target = $region24
        $region23: #{tpu_custom_call.1} parent=11 // pred_region
          _
        $region24: #{tpu_custom_call.1} parent=11 // pred_fallthru
          _
        // Predicated region
        $region25: #{tpu_custom_call.1} parent=11 // pred_check
          %p347 = pneg %p187
        $region26: #{tpu_custom_call.1} parent=11 // pred_check_branch
          %349 = sbr.rel (%p347) target = $region28
        $region27: #{tpu_custom_call.1} parent=11 // pred_region
          _
        $region28: #{tpu_custom_call.1} parent=11 // pred_fallthru
          _
        // Predicated region
        $region29: #{tpu_custom_call.1} parent=11 // pred_check
          %p350 = pneg %p208
        $region30: #{tpu_custom_call.1} parent=11 // pred_check_branch
          %352 = sbr.rel (%p350) target = $region32
        $region31: #{tpu_custom_call.1} parent=11 // pred_region
          _
        $region32: #{tpu_custom_call.1} parent=11 // pred_fallthru
          _
        // Predicated region
        $region33: #{tpu_custom_call.1} parent=11 // pred_check
          %p353 = pneg %p229
        $region34: #{tpu_custom_call.1} parent=11 // pred_check_branch
          %355 = sbr.rel (%p353) target = $region36
        $region35: #{tpu_custom_call.1} parent=11 // pred_region
          _
        $region36: #{tpu_custom_call.1} parent=11 // pred_fallthru
          _
        // Predicated region
        $region37: #{tpu_custom_call.1} parent=11 // pred_check
          %p356 = pneg %p250
        $region38: #{tpu_custom_call.1} parent=11 // pred_check_branch
          %358 = sbr.rel (%p356) target = $region40
        $region39: #{tpu_custom_call.1} parent=11 // pred_region
          _
        $region40: #{tpu_custom_call.1} parent=11 // pred_fallthru
          _
        // Predicated region
        $region41: #{tpu_custom_call.1} parent=11 // pred_check
          %p359 = pneg %p271
        $region42: #{tpu_custom_call.1} parent=11 // pred_check_branch
          %361 = sbr.rel (%p359) target = $region44
        $region43: #{tpu_custom_call.1} parent=11 // pred_region
          _
        $region44: #{tpu_custom_call.1} parent=11 // pred_fallthru
          _
      $region12: #{tpu_custom_call.1} parent=5 // pred_fallthru
        _
      %p362 = scmp.lt.s32.totalorder %s25, 2
      // Predicated region
      $region45: #{tpu_custom_call.1} parent=5 // pred_check
        %p363 = pneg %p362
      $region46: #{tpu_custom_call.1} parent=5 // pred_check_branch
        %365 = sbr.rel (%p363) target = $region48
      $region47: #{tpu_custom_call.1} parent=5 // pred_region
        // Predicated region
        $region49: #{tpu_custom_call.1} parent=47 // pred_check
          %p366 = pneg %p45
        $region50: #{tpu_custom_call.1} parent=47 // pred_check_branch
          %368 = sbr.rel (%p366) target = $region52
        $region51: #{tpu_custom_call.1} parent=47 // pred_region
          %p369 = scmp.lt.s32.totalorder %s25, 1
          %s370 = scalar_select %p369, %s25, 1
          %s371 = smul.addr %s370, 8
          %s372 = scalar_lea.vmem %s0, %s371
        $region52: #{tpu_custom_call.1} parent=47 // pred_fallthru
          _
        // Predicated region
        $region53: #{tpu_custom_call.1} parent=47 // pred_check
          %p373 = pneg %p71
        $region54: #{tpu_custom_call.1} parent=47 // pred_check_branch
          %375 = sbr.rel (%p373) target = $region56
        $region55: #{tpu_custom_call.1} parent=47 // pred_region
          %p376 = scmp.lt.s32.totalorder %s25, 1
          %s377 = scalar_select %p376, %s25, 1
          %s378 = smul.addr %s377, 16
          %s379 = smul.addr %s378, 8
          %s380 = scalar_lea.vmem %s1, %s379
        $region56: #{tpu_custom_call.1} parent=47 // pred_fallthru
          _
        // Predicated region
        $region57: #{tpu_custom_call.1} parent=47 // pred_check
          %p381 = pneg %p97
        $region58: #{tpu_custom_call.1} parent=47 // pred_check_branch
          %383 = sbr.rel (%p381) target = $region60
        $region59: #{tpu_custom_call.1} parent=47 // pred_region
          %p384 = scmp.lt.s32.totalorder %s25, 1
          %s385 = scalar_select %p384, %s25, 1
          %s386 = smul.addr %s385, 16
          %s387 = smul.addr %s386, 8
          %s388 = scalar_lea.vmem %s2, %s387
        $region60: #{tpu_custom_call.1} parent=47 // pred_fallthru
          _
      $region48: #{tpu_custom_call.1} parent=5 // pred_fallthru
        _
      %p389 = scmp.le.s32.totalorder 1, %s25
      %p390 = scmp.lt.s32.totalorder %s25, 3
      %p391 = pnand %p389, %p390
      %p392 = pneg %p391
      // Predicated region
      $region61: #{tpu_custom_call.1} parent=5 // pred_check
        _
      $region62: #{tpu_custom_call.1} parent=5 // pred_check_branch
        %394 = sbr.rel (%p391) target = $region64
      $region63: #{tpu_custom_call.1} parent=5 // pred_region
        %s395 = ssub.s32 %s25, 1
        %p396 = scmp.lt.s32.totalorder %s30, 1
        %s397 = scalar_select %p396, %s30, 1
        %s398 = smul.addr %s397, 8
        %s399 = scalar_lea.vmem %s0, %s398
        %p400 = pneg %p51
        %p401 = pneg %p48
        %p402 = scmp.lt.s32.totalorder %s30, 1
        %s403 = scalar_select %p402, %s30, 1
        %s404 = smul.addr %s403, 16
        %s405 = smul.addr %s404, 8
        %s406 = scalar_lea.vmem %s1, %s405
        %p407 = pneg %p77
        %p408 = pneg %p74
        %p409 = scmp.lt.s32.totalorder %s30, 1
        %s410 = scalar_select %p409, %s30, 1
        %s411 = smul.addr %s410, 16
        %s412 = smul.addr %s411, 8
        %s413 = scalar_lea.vmem %s2, %s412
        %p414 = pneg %p103
        %p415 = pneg %p100
        %p416 = pneg %p124
        %p417 = pneg %p121
        %p418 = pneg %p145
        %p419 = pneg %p142
        %p420 = pneg %p166
        %p421 = pneg %p163
        %p422 = pneg %p187
        %p423 = pneg %p184
        %p424 = pneg %p208
        %p425 = pneg %p205
        %p426 = pneg %p229
        %p427 = pneg %p226
        %p428 = pneg %p250
        %p429 = pneg %p247
        %p430 = pneg %p271
        %p431 = pneg %p268
        %p432 = pneg %p297
        %p433 = pneg %p294
        %s434 = sand.u32 %s284, 1
        %s435 = scalar_lea.sflag [#allocation3], %s434
        %s436 = sand.u32 %s284, 1
        %s437 = smul.addr %s436, 8
        %s438 = scalar_lea.vmem [#allocation2], %s437
        %p439 = pneg %p323
        %p440 = pneg %p320
        %s441 = sand.u32 %s310, 1
        %s442 = scalar_lea.sflag [#allocation5], %s441
        %s443 = sand.u32 %s310, 1
        %s444 = smul.addr %s443, 8
        %s445 = scalar_lea.vmem [#allocation4], %s444
        %p446 = scmp.lt.s32.totalorder %s30, 1
        %s447 = scalar_select %p446, %s30, 1
        %s448 = smul.addr %s447, 8
        %s449 = scalar_lea.vmem %s0, %s448
        %p450 = scmp.lt.s32.totalorder %s30, 1
        %s451 = scalar_select %p450, %s30, 1
        %s452 = smul.addr %s451, 16
        %s453 = smul.addr %s452, 8
        %s454 = scalar_lea.vmem %s1, %s453
        %p455 = scmp.lt.s32.totalorder %s30, 1
        %s456 = scalar_select %p455, %s30, 1
        %s457 = smul.addr %s456, 16
        %s458 = smul.addr %s457, 8
        %s459 = scalar_lea.vmem %s2, %s458
        %v460 = vld [vmem:[%s449] sm:$0xff]
        %v461 = vld [vmem:[%s454] sm:$0xff]
        %v462 = vld [vmem:[%s454 + $0x8] sm:$0xff]
        %v463 = vld [vmem:[%s454 + $0x10] sm:$0xff]
        %v464 = vld [vmem:[%s454 + $0x18] sm:$0xff]
        %v465 = vld [vmem:[%s454 + $0x20] sm:$0xff]
        %v466 = vld [vmem:[%s454 + $0x28] sm:$0xff]
        %v467 = vld [vmem:[%s454 + $0x30] sm:$0xff]
        %v468 = vld [vmem:[%s454 + $0x38] sm:$0xff]
        %v469 = vld [vmem:[%s454 + $0x40] sm:$0xff]
        %v470 = vld [vmem:[%s454 + $0x48] sm:$0xff]
        %v471 = vld [vmem:[%s454 + $0x50] sm:$0xff]
        %v472 = vld [vmem:[%s454 + $0x58] sm:$0xff]
        %v473 = vld [vmem:[%s454 + $0x60] sm:$0xff]
        %v474 = vld [vmem:[%s454 + $0x68] sm:$0xff]
        %v475 = vld [vmem:[%s454 + $0x70] sm:$0xff]
        %v476 = vld [vmem:[%s454 + $0x78] sm:$0xff]
        %v477 = vld [vmem:[%s459] sm:$0xff]
        %v478 = vld [vmem:[%s459 + $0x8] sm:$0xff]
        %v479 = vld [vmem:[%s459 + $0x10] sm:$0xff]
        %v480 = vld [vmem:[%s459 + $0x18] sm:$0xff]
        %v481 = vld [vmem:[%s459 + $0x20] sm:$0xff]
        %v482 = vld [vmem:[%s459 + $0x28] sm:$0xff]
        %v483 = vld [vmem:[%s459 + $0x30] sm:$0xff]
        %v484 = vld [vmem:[%s459 + $0x38] sm:$0xff]
        %v485 = vld [vmem:[%s459 + $0x40] sm:$0xff]
        %v486 = vld [vmem:[%s459 + $0x48] sm:$0xff]
        %v487 = vld [vmem:[%s459 + $0x50] sm:$0xff]
        %v488 = vld [vmem:[%s459 + $0x58] sm:$0xff]
        %v489 = vld [vmem:[%s459 + $0x60] sm:$0xff]
        %v490 = vld [vmem:[%s459 + $0x68] sm:$0xff]
        %v491 = vld [vmem:[%s459 + $0x70] sm:$0xff]
        %v492 = vld [vmem:[%s459 + $0x78] sm:$0xff]
        %v493 = vld [vmem:[%s3] sm:$0xff]
        %v494 = vld [vmem:[%s3 + $0x8] sm:$0xff]
        %v495 = vld [vmem:[%s3 + $0x10] sm:$0xff]
        %v496 = vld [vmem:[%s3 + $0x18] sm:$0xff]
        %v497 = vld [vmem:[%s4] sm:$0x1]
        %v499 = vlaneseq
        %v500 = vshrl.u32 %v499, 7
        %v501 = vsub.s32 0, %v500
        %v502 = vrot.slane %v497, %v501
        %vm504 = vcmask 261120
        %v506 = vsel %vm504, %v460, 0
        %508 = vmatprep.subr.mxu0 0.0
        %509 = vmatpush1.msra.mxu0 %v493
        %510 = vmatprep.subr.mxu0 0.0
        %511 = vmatpush1.msra.mxu0 %v494
        %512 = vmatprep.subr.mxu0 0.0
        %513 = vmatpush1.msra.mxu0 %v495
        %514 = vmatprep.subr.mxu0 0.0
        %515 = vmatpush1.msra.mxu0 %v496
        %516 = vmatprep.subr.mxu0 0.0
        %517 = vmatpush1.msra.mxu0 0.0
        %518 = vmatprep.subr.mxu0 0.0
        %519 = vmatpush1.msra.mxu0 0.0
        %520 = vmatprep.subr.mxu0 0.0
        %521 = vmatpush1.msra.mxu0 0.0
        %522 = vmatprep.subr.mxu0 0.0
        %523 = vmatpush1.msra.mxu0 0.0
        %524 = vmatprep.subr.mxu0 0.0
        %525 = vmatpush1.msra.mxu0 0.0
        %526 = vmatprep.subr.mxu0 0.0
        %527 = vmatpush1.msra.mxu0 0.0
        %528 = vmatprep.subr.mxu0 0.0
        %529 = vmatpush1.msra.mxu0 0.0
        %530 = vmatprep.subr.mxu0 0.0
        %531 = vmatpush1.msra.mxu0 0.0
        %532 = vmatprep.subr.mxu0 0.0
        %533 = vmatpush1.msra.mxu0 0.0
        %534 = vmatprep.subr.mxu0 0.0
        %535 = vmatpush1.msra.mxu0 0.0
        %536 = vmatprep.subr.mxu0 0.0
        %537 = vmatpush1.msra.mxu0 0.0
        %538 = vmatprep.subr.mxu0 0.0
        %539 = vmatpush1.msra.mxu0 0.0
        %540 = vmatprep.subr.mxu0 0.0
        %541 = vmatpush1.msra.mxu0 0.0
        %542 = vmatprep.subr.mxu0 0.0
        %543 = vmatpush1.msra.mxu0 0.0
        %544 = vmatprep.subr.mxu0 0.0
        %545 = vmatpush1.msra.mxu0 0.0
        %546 = vmatprep.subr.mxu0 0.0
        %547 = vmatpush1.msra.mxu0 0.0
        %548 = vmatprep.subr.mxu0 0.0
        %549 = vmatpush1.msra.mxu0 0.0
        %550 = vmatprep.subr.mxu0 0.0
        %551 = vmatpush1.msra.mxu0 0.0
        %552 = vmatprep.subr.mxu0 0.0
        %553 = vmatpush1.msra.mxu0 0.0
        %554 = vmatprep.subr.mxu0 0.0
        %555 = vmatpush1.msra.mxu0 0.0
        %556 = vmatprep.subr.mxu0 0.0
        %557 = vmatpush1.msra.mxu0 0.0
        %558 = vmatprep.subr.mxu0 0.0
        %559 = vmatpush1.msra.mxu0 0.0
        %560 = vmatprep.subr.mxu0 0.0
        %561 = vmatpush1.msra.mxu0 0.0
        %562 = vmatprep.subr.mxu0 0.0
        %563 = vmatpush1.msra.mxu0 0.0
        %564 = vmatprep.subr.mxu0 0.0
        %565 = vmatpush1.msra.mxu0 0.0
        %566 = vmatprep.subr.mxu0 0.0
        %567 = vmatpush1.msra.mxu0 0.0
        %568 = vmatprep.subr.mxu0 0.0
        %569 = vmatpush1.msra.mxu0 0.0
        %570 = vmatprep.subr.mxu0 0.0
        %571 = vmatpush1.msra.mxu0 0.0
        %572 = vmatprep.mubr.f32.mxu0 0.0
        %573 = vmatmul.mubr.f32.gmra.mrb[0].mxu0 %v506
        %v574 = vpop.f32.mrb[0].mxu0
        %v575 = vadd.f32 %v502, %v574
        %v576 = vpop.f32.mrb[0].mxu0
        %577 = vdwg.mxu0
        %v578 = vld [vmem:[%s5] sm:$0xff]
        %v579 = vld [vmem:[%s5 + $0x8] sm:$0xff]
        %v580 = vld [vmem:[%s5 + $0x10] sm:$0xff]
        %v581 = vld [vmem:[%s5 + $0x18] sm:$0xff]
        %v582 = vld [vmem:[%s6] sm:$0x1]
        %v584 = vlaneseq
        %v585 = vshrl.u32 %v584, 7
        %v586 = vsub.s32 0, %v585
        %v587 = vrot.slane %v582, %v586
        %v590 = vsel %vm504, %v461, 0
        %v593 = vsel %vm504, %v462, 0
        %v596 = vsel %vm504, %v463, 0
        %v599 = vsel %vm504, %v464, 0
        %v602 = vsel %vm504, %v465, 0
        %v605 = vsel %vm504, %v466, 0
        %v608 = vsel %vm504, %v467, 0
        %v611 = vsel %vm504, %v468, 0
        %v614 = vsel %vm504, %v469, 0
        %v617 = vsel %vm504, %v470, 0
        %v620 = vsel %vm504, %v471, 0
        %v623 = vsel %vm504, %v472, 0
        %v626 = vsel %vm504, %v473, 0
        %v629 = vsel %vm504, %v474, 0
        %v632 = vsel %vm504, %v475, 0
        %v635 = vsel %vm504, %v476, 0
        %637 = vmatprep.subr.mxu0 0.0
        %638 = vmatpush1.msra.mxu0 %v578
        %639 = vmatprep.subr.mxu0 0.0
        %640 = vmatpush1.msra.mxu0 %v579
        %641 = vmatprep.subr.mxu0 0.0
        %642 = vmatpush1.msra.mxu0 %v580
        %643 = vmatprep.subr.mxu0 0.0
        %644 = vmatpush1.msra.mxu0 %v581
        %645 = vmatprep.subr.mxu0 0.0
        %646 = vmatpush1.msra.mxu0 0.0
        %647 = vmatprep.subr.mxu0 0.0
        %648 = vmatpush1.msra.mxu0 0.0
        %649 = vmatprep.subr.mxu0 0.0
        %650 = vmatpush1.msra.mxu0 0.0
        %651 = vmatprep.subr.mxu0 0.0
        %652 = vmatpush1.msra.mxu0 0.0
        %653 = vmatprep.subr.mxu0 0.0
        %654 = vmatpush1.msra.mxu0 0.0
        %655 = vmatprep.subr.mxu0 0.0
        %656 = vmatpush1.msra.mxu0 0.0
        %657 = vmatprep.subr.mxu0 0.0
        %658 = vmatpush1.msra.mxu0 0.0
        %659 = vmatprep.subr.mxu0 0.0
        %660 = vmatpush1.msra.mxu0 0.0
        %661 = vmatprep.subr.mxu0 0.0
        %662 = vmatpush1.msra.mxu0 0.0
        %663 = vmatprep.subr.mxu0 0.0
        %664 = vmatpush1.msra.mxu0 0.0
        %665 = vmatprep.subr.mxu0 0.0
        %666 = vmatpush1.msra.mxu0 0.0
        %667 = vmatprep.subr.mxu0 0.0
        %668 = vmatpush1.msra.mxu0 0.0
        %669 = vmatprep.subr.mxu0 0.0
        %670 = vmatpush1.msra.mxu0 0.0
        %671 = vmatprep.subr.mxu0 0.0
        %672 = vmatpush1.msra.mxu0 0.0
        %673 = vmatprep.subr.mxu0 0.0
        %674 = vmatpush1.msra.mxu0 0.0
        %675 = vmatprep.subr.mxu0 0.0
        %676 = vmatpush1.msra.mxu0 0.0
        %677 = vmatprep.subr.mxu0 0.0
        %678 = vmatpush1.msra.mxu0 0.0
        %679 = vmatprep.subr.mxu0 0.0
        %680 = vmatpush1.msra.mxu0 0.0
        %681 = vmatprep.subr.mxu0 0.0
        %682 = vmatpush1.msra.mxu0 0.0
        %683 = vmatprep.subr.mxu0 0.0
        %684 = vmatpush1.msra.mxu0 0.0
        %685 = vmatprep.subr.mxu0 0.0
        %686 = vmatpush1.msra.mxu0 0.0
        %687 = vmatprep.subr.mxu0 0.0
        %688 = vmatpush1.msra.mxu0 0.0
        %689 = vmatprep.subr.mxu0 0.0
        %690 = vmatpush1.msra.mxu0 0.0
        %691 = vmatprep.subr.mxu0 0.0
        %692 = vmatpush1.msra.mxu0 0.0
        %693 = vmatprep.subr.mxu0 0.0
        %694 = vmatpush1.msra.mxu0 0.0
        %695 = vmatprep.subr.mxu0 0.0
        %696 = vmatpush1.msra.mxu0 0.0
        %697 = vmatprep.subr.mxu0 0.0
        %698 = vmatpush1.msra.mxu0 0.0
        %699 = vmatprep.subr.mxu0 0.0
        %700 = vmatpush1.msra.mxu0 0.0
        %701 = vmatprep.mubr.f32.mxu0 0.0
        %702 = vmatmul.mubr.f32.gmra.mrb[0].mxu0 %v590
        %v703 = vpop.f32.mrb[0].mxu0
        %v704 = vadd.f32 %v587, %v703
        %v705 = vpop.f32.mrb[0].mxu0
        %706 = vmatprep.mubr.f32.mxu0 0.0
        %707 = vmatmul.mubr.f32.gmra.mrb[0].mxu0 %v593
        %v708 = vpop.f32.mrb[0].mxu0
        %v709 = vadd.f32 %v587, %v708
        %v710 = vpop.f32.mrb[0].mxu0
        %711 = vmatprep.mubr.f32.mxu0 0.0
        %712 = vmatmul.mubr.f32.gmra.mrb[0].mxu0 %v596
        %v713 = vpop.f32.mrb[0].mxu0
        %v714 = vadd.f32 %v587, %v713
        %v715 = vpop.f32.mrb[0].mxu0
        %716 = vmatprep.mubr.f32.mxu0 0.0
        %717 = vmatmul.mubr.f32.gmra.mrb[0].mxu0 %v599
        %v718 = vpop.f32.mrb[0].mxu0
        %v719 = vadd.f32 %v587, %v718
        %v720 = vpop.f32.mrb[0].mxu0
        %721 = vmatprep.mubr.f32.mxu0 0.0
        %722 = vmatmul.mubr.f32.gmra.mrb[0].mxu0 %v602
        %v723 = vpop.f32.mrb[0].mxu0
        %v724 = vadd.f32 %v587, %v723
        %v725 = vpop.f32.mrb[0].mxu0
        %726 = vmatprep.mubr.f32.mxu0 0.0
        %727 = vmatmul.mubr.f32.gmra.mrb[0].mxu0 %v605
        %v728 = vpop.f32.mrb[0].mxu0
        %v729 = vadd.f32 %v587, %v728
        %v730 = vpop.f32.mrb[0].mxu0
        %731 = vmatprep.mubr.f32.mxu0 0.0
        %732 = vmatmul.mubr.f32.gmra.mrb[0].mxu0 %v608
        %v733 = vpop.f32.mrb[0].mxu0
        %v734 = vadd.f32 %v587, %v733
        %v735 = vpop.f32.mrb[0].mxu0
        %736 = vmatprep.mubr.f32.mxu0 0.0
        %737 = vmatmul.mubr.f32.gmra.mrb[0].mxu0 %v611
        %v738 = vpop.f32.mrb[0].mxu0
        %v739 = vadd.f32 %v587, %v738
        %v740 = vpop.f32.mrb[0].mxu0
        %741 = vmatprep.mubr.f32.mxu0 0.0
        %742 = vmatmul.mubr.f32.gmra.mrb[0].mxu0 %v614
        %v743 = vpop.f32.mrb[0].mxu0
        %v744 = vadd.f32 %v587, %v743
        %v745 = vpop.f32.mrb[0].mxu0
        %746 = vmatprep.mubr.f32.mxu0 0.0
        %747 = vmatmul.mubr.f32.gmra.mrb[0].mxu0 %v617
        %v748 = vpop.f32.mrb[0].mxu0
        %v749 = vadd.f32 %v587, %v748
        %v750 = vpop.f32.mrb[0].mxu0
        %751 = vmatprep.mubr.f32.mxu0 0.0
        %752 = vmatmul.mubr.f32.gmra.mrb[0].mxu0 %v620
        %v753 = vpop.f32.mrb[0].mxu0
        %v754 = vadd.f32 %v587, %v753
        %v755 = vpop.f32.mrb[0].mxu0
        %756 = vmatprep.mubr.f32.mxu0 0.0
        %757 = vmatmul.mubr.f32.gmra.mrb[0].mxu0 %v623
        %v758 = vpop.f32.mrb[0].mxu0
        %v759 = vadd.f32 %v587, %v758
        %v760 = vpop.f32.mrb[0].mxu0
        %761 = vmatprep.mubr.f32.mxu0 0.0
        %762 = vmatmul.mubr.f32.gmra.mrb[0].mxu0 %v626
        %v763 = vpop.f32.mrb[0].mxu0
        %v764 = vadd.f32 %v587, %v763
        %v765 = vpop.f32.mrb[0].mxu0
        %766 = vmatprep.mubr.f32.mxu0 0.0
        %767 = vmatmul.mubr.f32.gmra.mrb[0].mxu0 %v629
        %v768 = vpop.f32.mrb[0].mxu0
        %v769 = vadd.f32 %v587, %v768
        %v770 = vpop.f32.mrb[0].mxu0
        %771 = vmatprep.mubr.f32.mxu0 0.0
        %772 = vmatmul.mubr.f32.gmra.mrb[0].mxu0 %v632
        %v773 = vpop.f32.mrb[0].mxu0
        %v774 = vadd.f32 %v587, %v773
        %v775 = vpop.f32.mrb[0].mxu0
        %776 = vmatprep.mubr.f32.mxu0 0.0
        %777 = vmatmul.mubr.f32.gmra.mrb[0].mxu0 %v635
        %v778 = vpop.f32.mrb[0].mxu0
        %v779 = vadd.f32 %v587, %v778
        %v780 = vpop.f32.mrb[0].mxu0
        %781 = vdwg.mxu0
        %v782 = vld [vmem:[%s7] sm:$0xff]
        %v783 = vld [vmem:[%s7 + $0x8] sm:$0xff]
        %v784 = vld [vmem:[%s7 + $0x10] sm:$0xff]
        %v785 = vld [vmem:[%s7 + $0x18] sm:$0xff]
        %v786 = vld [vmem:[%s8] sm:$0x1]
        %v788 = vlaneseq
        %v789 = vshrl.u32 %v788, 7
        %v790 = vsub.s32 0, %v789
        %v791 = vrot.slane %v786, %v790
        %v794 = vsel %vm504, %v477, 0
        %v797 = vsel %vm504, %v478, 0
        %v800 = vsel %vm504, %v479, 0
        %v803 = vsel %vm504, %v480, 0
        %v806 = vsel %vm504, %v481, 0
        %v809 = vsel %vm504, %v482, 0
        %v812 = vsel %vm504, %v483, 0
        %v815 = vsel %vm504, %v484, 0
        %v818 = vsel %vm504, %v485, 0
        %v821 = vsel %vm504, %v486, 0
        %v824 = vsel %vm504, %v487, 0
        %v827 = vsel %vm504, %v488, 0
        %v830 = vsel %vm504, %v489, 0
        %v833 = vsel %vm504, %v490, 0
        %v836 = vsel %vm504, %v491, 0
        %v839 = vsel %vm504, %v492, 0
        %841 = vmatprep.subr.mxu0 0.0
        %842 = vmatpush1.msra.mxu0 %v782
        %843 = vmatprep.subr.mxu0 0.0
        %844 = vmatpush1.msra.mxu0 %v783
        %845 = vmatprep.subr.mxu0 0.0
        %846 = vmatpush1.msra.mxu0 %v784
        %847 = vmatprep.subr.mxu0 0.0
        %848 = vmatpush1.msra.mxu0 %v785
        %849 = vmatprep.subr.mxu0 0.0
        %850 = vmatpush1.msra.mxu0 0.0
        %851 = vmatprep.subr.mxu0 0.0
        %852 = vmatpush1.msra.mxu0 0.0
        %853 = vmatprep.subr.mxu0 0.0
        %854 = vmatpush1.msra.mxu0 0.0
        %855 = vmatprep.subr.mxu0 0.0
        %856 = vmatpush1.msra.mxu0 0.0
        %857 = vmatprep.subr.mxu0 0.0
        %858 = vmatpush1.msra.mxu0 0.0
        %859 = vmatprep.subr.mxu0 0.0
        %860 = vmatpush1.msra.mxu0 0.0
        %861 = vmatprep.subr.mxu0 0.0
        %862 = vmatpush1.msra.mxu0 0.0
        %863 = vmatprep.subr.mxu0 0.0
        %864 = vmatpush1.msra.mxu0 0.0
        %865 = vmatprep.subr.mxu0 0.0
        %866 = vmatpush1.msra.mxu0 0.0
        %867 = vmatprep.subr.mxu0 0.0
        %868 = vmatpush1.msra.mxu0 0.0
        %869 = vmatprep.subr.mxu0 0.0
        %870 = vmatpush1.msra.mxu0 0.0
        %871 = vmatprep.subr.mxu0 0.0
        %872 = vmatpush1.msra.mxu0 0.0
        %873 = vmatprep.subr.mxu0 0.0
        %874 = vmatpush1.msra.mxu0 0.0
        %875 = vmatprep.subr.mxu0 0.0
        %876 = vmatpush1.msra.mxu0 0.0
        %877 = vmatprep.subr.mxu0 0.0
        %878 = vmatpush1.msra.mxu0 0.0
        %879 = vmatprep.subr.mxu0 0.0
        %880 = vmatpush1.msra.mxu0 0.0
        %881 = vmatprep.subr.mxu0 0.0
        %882 = vmatpush1.msra.mxu0 0.0
        %883 = vmatprep.subr.mxu0 0.0
        %884 = vmatpush1.msra.mxu0 0.0
        %885 = vmatprep.subr.mxu0 0.0
        %886 = vmatpush1.msra.mxu0 0.0
        %887 = vmatprep.subr.mxu0 0.0
        %888 = vmatpush1.msra.mxu0 0.0
        %889 = vmatprep.subr.mxu0 0.0
        %890 = vmatpush1.msra.mxu0 0.0
        %891 = vmatprep.subr.mxu0 0.0
        %892 = vmatpush1.msra.mxu0 0.0
        %893 = vmatprep.subr.mxu0 0.0
        %894 = vmatpush1.msra.mxu0 0.0
        %895 = vmatprep.subr.mxu0 0.0
        %896 = vmatpush1.msra.mxu0 0.0
        %897 = vmatprep.subr.mxu0 0.0
        %898 = vmatpush1.msra.mxu0 0.0
        %899 = vmatprep.subr.mxu0 0.0
        %900 = vmatpush1.msra.mxu0 0.0
        %901 = vmatprep.subr.mxu0 0.0
        %902 = vmatpush1.msra.mxu0 0.0
        %903 = vmatprep.subr.mxu0 0.0
        %904 = vmatpush1.msra.mxu0 0.0
        %905 = vmatprep.mubr.f32.mxu0 0.0
        %906 = vmatmul.mubr.f32.gmra.mrb[0].mxu0 %v794
        %v907 = vpop.f32.mrb[0].mxu0
        %v908 = vadd.f32 %v791, %v907
        %v909 = vpop.f32.mrb[0].mxu0
        %910 = vmatprep.mubr.f32.mxu0 0.0
        %911 = vmatmul.mubr.f32.gmra.mrb[0].mxu0 %v797
        %v912 = vpop.f32.mrb[0].mxu0
        %v913 = vadd.f32 %v791, %v912
        %v914 = vpop.f32.mrb[0].mxu0
        %915 = vmatprep.mubr.f32.mxu0 0.0
        %916 = vmatmul.mubr.f32.gmra.mrb[0].mxu0 %v800
        %v917 = vpop.f32.mrb[0].mxu0
        %v918 = vadd.f32 %v791, %v917
        %v919 = vpop.f32.mrb[0].mxu0
        %920 = vmatprep.mubr.f32.mxu0 0.0
        %921 = vmatmul.mubr.f32.gmra.mrb[0].mxu0 %v803
        %v922 = vpop.f32.mrb[0].mxu0
        %v923 = vadd.f32 %v791, %v922
        %v924 = vpop.f32.mrb[0].mxu0
        %925 = vmatprep.mubr.f32.mxu0 0.0
        %926 = vmatmul.mubr.f32.gmra.mrb[0].mxu0 %v806
        %v927 = vpop.f32.mrb[0].mxu0
        %v928 = vadd.f32 %v791, %v927
        %v929 = vpop.f32.mrb[0].mxu0
        %930 = vmatprep.mubr.f32.mxu0 0.0
        %931 = vmatmul.mubr.f32.gmra.mrb[0].mxu0 %v809
        %v932 = vpop.f32.mrb[0].mxu0
        %v933 = vadd.f32 %v791, %v932
        %v934 = vpop.f32.mrb[0].mxu0
        %935 = vmatprep.mubr.f32.mxu0 0.0
        %936 = vmatmul.mubr.f32.gmra.mrb[0].mxu0 %v812
        %v937 = vpop.f32.mrb[0].mxu0
        %v938 = vadd.f32 %v791, %v937
        %v939 = vpop.f32.mrb[0].mxu0
        %940 = vmatprep.mubr.f32.mxu0 0.0
        %941 = vmatmul.mubr.f32.gmra.mrb[0].mxu0 %v815
        %v942 = vpop.f32.mrb[0].mxu0
        %v943 = vadd.f32 %v791, %v942
        %v944 = vpop.f32.mrb[0].mxu0
        %945 = vmatprep.mubr.f32.mxu0 0.0
        %946 = vmatmul.mubr.f32.gmra.mrb[0].mxu0 %v818
        %v947 = vpop.f32.mrb[0].mxu0
        %v948 = vadd.f32 %v791, %v947
        %v949 = vpop.f32.mrb[0].mxu0
        %950 = vmatprep.mubr.f32.mxu0 0.0
        %951 = vmatmul.mubr.f32.gmra.mrb[0].mxu0 %v821
        %v952 = vpop.f32.mrb[0].mxu0
        %v953 = vadd.f32 %v791, %v952
        %v954 = vpop.f32.mrb[0].mxu0
        %955 = vmatprep.mubr.f32.mxu0 0.0
        %956 = vmatmul.mubr.f32.gmra.mrb[0].mxu0 %v824
        %v957 = vpop.f32.mrb[0].mxu0
        %v958 = vadd.f32 %v791, %v957
        %v959 = vpop.f32.mrb[0].mxu0
        %960 = vmatprep.mubr.f32.mxu0 0.0
        %961 = vmatmul.mubr.f32.gmra.mrb[0].mxu0 %v827
        %v962 = vpop.f32.mrb[0].mxu0
        %v963 = vadd.f32 %v791, %v962
        %v964 = vpop.f32.mrb[0].mxu0
        %965 = vmatprep.mubr.f32.mxu0 0.0
        %966 = vmatmul.mubr.f32.gmra.mrb[0].mxu0 %v830
        %v967 = vpop.f32.mrb[0].mxu0
        %v968 = vadd.f32 %v791, %v967
        %v969 = vpop.f32.mrb[0].mxu0
        %970 = vmatprep.mubr.f32.mxu0 0.0
        %971 = vmatmul.mubr.f32.gmra.mrb[0].mxu0 %v833
        %v972 = vpop.f32.mrb[0].mxu0
        %v973 = vadd.f32 %v791, %v972
        %v974 = vpop.f32.mrb[0].mxu0
        %975 = vmatprep.mubr.f32.mxu0 0.0
        %976 = vmatmul.mubr.f32.gmra.mrb[0].mxu0 %v836
        %v977 = vpop.f32.mrb[0].mxu0
        %v978 = vadd.f32 %v791, %v977
        %v979 = vpop.f32.mrb[0].mxu0
        %980 = vmatprep.mubr.f32.mxu0 0.0
        %981 = vmatmul.mubr.f32.gmra.mrb[0].mxu0 %v839
        %v982 = vpop.f32.mrb[0].mxu0
        %v983 = vadd.f32 %v791, %v982
        %v984 = vpop.f32.mrb[0].mxu0
        %985 = vdwg.mxu0
        %v986 = vlaneseq
        %v987 = vand.u32 %v986, 127
        %vm988 = vcmp.lt.s32.totalorder %v987, 8
        %vm989 = vcmask 64512
        %v991 = vsel %vm989, %v575, 0
        %v994 = vsel %vm989, %v704, 0
        %v997 = vsel %vm989, %v709, 0
        %v1000 = vsel %vm989, %v714, 0
        %v1003 = vsel %vm989, %v719, 0
        %v1006 = vsel %vm989, %v724, 0
        %v1009 = vsel %vm989, %v729, 0
        %v1012 = vsel %vm989, %v734, 0
        %v1015 = vsel %vm989, %v739, 0
        %v1018 = vsel %vm989, %v744, 0
        %v1021 = vsel %vm989, %v749, 0
        %v1024 = vsel %vm989, %v754, 0
        %v1027 = vsel %vm989, %v759, 0
        %v1030 = vsel %vm989, %v764, 0
        %v1033 = vsel %vm989, %v769, 0
        %v1036 = vsel %vm989, %v774, 0
        %v1039 = vsel %vm989, %v779, 0
        %1041 = vmatprep.subr.mxu0 0.0
        %1042 = vmatpush1.xpose.msra.mxu0 %v994
        %1043 = vmatprep.subr.mxu0 0.0
        %1044 = vmatpush1.xpose.msra.mxu0 %v997
        %1045 = vmatprep.subr.mxu0 0.0
        %1046 = vmatpush1.xpose.msra.mxu0 %v1000
        %1047 = vmatprep.subr.mxu0 0.0
        %1048 = vmatpush1.xpose.msra.mxu0 %v1003
        %1049 = vmatprep.subr.mxu0 0.0
        %1050 = vmatpush1.xpose.msra.mxu0 %v1006
        %1051 = vmatprep.subr.mxu0 0.0
        %1052 = vmatpush1.xpose.msra.mxu0 %v1009
        %1053 = vmatprep.subr.mxu0 0.0
        %1054 = vmatpush1.xpose.msra.mxu0 %v1012
        %1055 = vmatprep.subr.mxu0 0.0
        %1056 = vmatpush1.xpose.msra.mxu0 %v1015
        %1057 = vmatprep.subr.mxu0 0.0
        %1058 = vmatpush1.xpose.msra.mxu0 %v1018
        %1059 = vmatprep.subr.mxu0 0.0
        %1060 = vmatpush1.xpose.msra.mxu0 %v1021
        %1061 = vmatprep.subr.mxu0 0.0
        %1062 = vmatpush1.xpose.msra.mxu0 %v1024
        %1063 = vmatprep.subr.mxu0 0.0
        %1064 = vmatpush1.xpose.msra.mxu0 %v1027
        %1065 = vmatprep.subr.mxu0 0.0
        %1066 = vmatpush1.xpose.msra.mxu0 %v1030
        %1067 = vmatprep.subr.mxu0 0.0
        %1068 = vmatpush1.xpose.msra.mxu0 %v1033
        %1069 = vmatprep.subr.mxu0 0.0
        %1070 = vmatpush1.xpose.msra.mxu0 %v1036
        %1071 = vmatprep.subr.mxu0 0.0
        %1072 = vmatpush1.xpose.msra.mxu0 %v1039
        %1073 = vmatprep.subr.mxu0 0.0
        %1074 = vmatpush1.xpose.msra.mxu0 0.0
        %1075 = vmatprep.subr.mxu0 0.0
        %1076 = vmatpush1.xpose.msra.mxu0 0.0
        %1077 = vmatprep.subr.mxu0 0.0
        %1078 = vmatpush1.xpose.msra.mxu0 0.0
        %1079 = vmatprep.subr.mxu0 0.0
        %1080 = vmatpush1.xpose.msra.mxu0 0.0
        %1081 = vmatprep.subr.mxu0 0.0
        %1082 = vmatpush1.xpose.msra.mxu0 0.0
        %1083 = vmatprep.subr.mxu0 0.0
        %1084 = vmatpush1.xpose.msra.mxu0 0.0
        %1085 = vmatprep.subr.mxu0 0.0
        %1086 = vmatpush1.xpose.msra.mxu0 0.0
        %1087 = vmatprep.subr.mxu0 0.0
        %1088 = vmatpush1.xpose.msra.mxu0 0.0
        %1089 = vmatprep.subr.mxu0 0.0
        %1090 = vmatpush1.xpose.msra.mxu0 0.0
        %1091 = vmatprep.subr.mxu0 0.0
        %1092 = vmatpush1.xpose.msra.mxu0 0.0
        %1093 = vmatprep.subr.mxu0 0.0
        %1094 = vmatpush1.xpose.msra.mxu0 0.0
        %1095 = vmatprep.subr.mxu0 0.0
        %1096 = vmatpush1.xpose.msra.mxu0 0.0
        %1097 = vmatprep.subr.mxu0 0.0
        %1098 = vmatpush1.xpose.msra.mxu0 0.0
        %1099 = vmatprep.subr.mxu0 0.0
        %1100 = vmatpush1.xpose.msra.mxu0 0.0
        %1101 = vmatprep.subr.mxu0 0.0
        %1102 = vmatpush1.xpose.msra.mxu0 0.0
        %1103 = vmatprep.subr.mxu0 0.0
        %1104 = vmatpush1.xpose.msra.mxu0 0.0
        %1105 = vmatprep.mubr.f32.mxu0 0.0
        %1106 = vmatmul.mubr.f32.gmra.mrb[0].mxu0 %v991
        %v1107 = vpop.f32.mrb[0].mxu0
        %v1108 = vadd.f32 0.0, %v1107
        %v1109 = vpop.f32.mrb[0].mxu0
        %1110 = vdwg.mxu0
        %v1111 = vsel %vm988, %v1108, -1e+30
        %1112 = vmax.xlane.f32.xlu0 %v1111
        %v1113 = vpop.xlane.xlu0 %1112
        %v1114 = vsub.f32 %v1111, %v1113
        %v1115 = vmul.f32 %v1114, 1.442695
        %v1116 = vpow.pop %v1115
        %1117 = vadd.xlane.f32.xlu0 %v1116
        %v1118 = vpop.xlane.xlu0 %1117
        %v1119 = vrcp.pop %v1118
        %v1120 = vmul.f32 %v1116, %v1119
        %v1121 = vadd.f32 %v1120, 0.0
        %1122 = vmatprep.subr.mxu0 0.0
        %1123 = vmatpush1.msra.mxu0 %v908
        %1124 = vmatprep.subr.mxu0 0.0
        %1125 = vmatpush1.msra.mxu0 %v913
        %1126 = vmatprep.subr.mxu0 0.0
        %1127 = vmatpush1.msra.mxu0 %v918
        %1128 = vmatprep.subr.mxu0 0.0
        %1129 = vmatpush1.msra.mxu0 %v923
        %1130 = vmatprep.subr.mxu0 0.0
        %1131 = vmatpush1.msra.mxu0 %v928
        %1132 = vmatprep.subr.mxu0 0.0
        %1133 = vmatpush1.msra.mxu0 %v933
        %1134 = vmatprep.subr.mxu0 0.0
        %1135 = vmatpush1.msra.mxu0 %v938
        %1136 = vmatprep.subr.mxu0 0.0
        %1137 = vmatpush1.msra.mxu0 %v943
        %1138 = vmatprep.subr.mxu0 0.0
        %1139 = vmatpush1.msra.mxu0 %v948
        %1140 = vmatprep.subr.mxu0 0.0
        %1141 = vmatpush1.msra.mxu0 %v953
        %1142 = vmatprep.subr.mxu0 0.0
        %1143 = vmatpush1.msra.mxu0 %v958
        %1144 = vmatprep.subr.mxu0 0.0
        %1145 = vmatpush1.msra.mxu0 %v963
        %1146 = vmatprep.subr.mxu0 0.0
        %1147 = vmatpush1.msra.mxu0 %v968
        %1148 = vmatprep.subr.mxu0 0.0
        %1149 = vmatpush1.msra.mxu0 %v973
        %1150 = vmatprep.subr.mxu0 0.0
        %1151 = vmatpush1.msra.mxu0 %v978
        %1152 = vmatprep.subr.mxu0 0.0
        %1153 = vmatpush1.msra.mxu0 %v983
        %1154 = vmatprep.subr.mxu0 0.0
        %1155 = vmatpush1.msra.mxu0 0.0
        %1156 = vmatprep.subr.mxu0 0.0
        %1157 = vmatpush1.msra.mxu0 0.0
        %1158 = vmatprep.subr.mxu0 0.0
        %1159 = vmatpush1.msra.mxu0 0.0
        %1160 = vmatprep.subr.mxu0 0.0
        %1161 = vmatpush1.msra.mxu0 0.0
        %1162 = vmatprep.subr.mxu0 0.0
        %1163 = vmatpush1.msra.mxu0 0.0
        %1164 = vmatprep.subr.mxu0 0.0
        %1165 = vmatpush1.msra.mxu0 0.0
        %1166 = vmatprep.subr.mxu0 0.0
        %1167 = vmatpush1.msra.mxu0 0.0
        %1168 = vmatprep.subr.mxu0 0.0
        %1169 = vmatpush1.msra.mxu0 0.0
        %1170 = vmatprep.subr.mxu0 0.0
        %1171 = vmatpush1.msra.mxu0 0.0
        %1172 = vmatprep.subr.mxu0 0.0
        %1173 = vmatpush1.msra.mxu0 0.0
        %1174 = vmatprep.subr.mxu0 0.0
        %1175 = vmatpush1.msra.mxu0 0.0
        %1176 = vmatprep.subr.mxu0 0.0
        %1177 = vmatpush1.msra.mxu0 0.0
        %1178 = vmatprep.subr.mxu0 0.0
        %1179 = vmatpush1.msra.mxu0 0.0
        %1180 = vmatprep.subr.mxu0 0.0
        %1181 = vmatpush1.msra.mxu0 0.0
        %1182 = vmatprep.subr.mxu0 0.0
        %1183 = vmatpush1.msra.mxu0 0.0
        %1184 = vmatprep.subr.mxu0 0.0
        %1185 = vmatpush1.msra.mxu0 0.0
        %1186 = vmatprep.mubr.f32.mxu0 0.0
        %1187 = vmatmul.mubr.f32.gmra.mrb[0].mxu0 %v1120
        %v1188 = vpop.f32.mrb[0].mxu0
        %v1189 = vadd.f32 0.0, %v1188
        %v1190 = vpop.f32.mrb[0].mxu0
        %1191 = vdwg.mxu0
        %v1192 = vld [vmem:[%s9] sm:$0xff]
        %1193 = vrot.lane.b32.xlu0 %v575, 120
        %v1194 = vpop.permute.xlu0 %1193
        %1195 = vrot.lane.b32.xlu0 %v704, 120
        %v1196 = vpop.permute.xlu0 %1195
        %1197 = vrot.lane.b32.xlu0 %v709, 120
        %v1198 = vpop.permute.xlu0 %1197
        %1199 = vrot.lane.b32.xlu0 %v714, 120
        %v1200 = vpop.permute.xlu0 %1199
        %1201 = vrot.lane.b32.xlu0 %v719, 120
        %v1202 = vpop.permute.xlu0 %1201
        %1203 = vrot.lane.b32.xlu0 %v724, 120
        %v1204 = vpop.permute.xlu0 %1203
        %1205 = vrot.lane.b32.xlu0 %v729, 120
        %v1206 = vpop.permute.xlu0 %1205
        %1207 = vrot.lane.b32.xlu0 %v734, 120
        %v1208 = vpop.permute.xlu0 %1207
        %1209 = vrot.lane.b32.xlu0 %v739, 120
        %v1210 = vpop.permute.xlu0 %1209
        %1211 = vrot.lane.b32.xlu0 %v744, 120
        %v1212 = vpop.permute.xlu0 %1211
        %1213 = vrot.lane.b32.xlu0 %v749, 120
        %v1214 = vpop.permute.xlu0 %1213
        %1215 = vrot.lane.b32.xlu0 %v754, 120
        %v1216 = vpop.permute.xlu0 %1215
        %1217 = vrot.lane.b32.xlu0 %v759, 120
        %v1218 = vpop.permute.xlu0 %1217
        %1219 = vrot.lane.b32.xlu0 %v764, 120
        %v1220 = vpop.permute.xlu0 %1219
        %1221 = vrot.lane.b32.xlu0 %v769, 120
        %v1222 = vpop.permute.xlu0 %1221
        %1223 = vrot.lane.b32.xlu0 %v774, 120
        %v1224 = vpop.permute.xlu0 %1223
        %1225 = vrot.lane.b32.xlu0 %v779, 120
        %v1226 = vpop.permute.xlu0 %1225
        %v1227 = vsel %vm989, %v1194, 0
        %v1229 = vsel %vm989, %v1196, 0
        %v1231 = vsel %vm989, %v1198, 0
        %v1233 = vsel %vm989, %v1200, 0
        %v1235 = vsel %vm989, %v1202, 0
        %v1237 = vsel %vm989, %v1204, 0
        %v1239 = vsel %vm989, %v1206, 0
        %v1241 = vsel %vm989, %v1208, 0
        %v1243 = vsel %vm989, %v1210, 0
        %v1245 = vsel %vm989, %v1212, 0
        %v1247 = vsel %vm989, %v1214, 0
        %v1249 = vsel %vm989, %v1216, 0
        %v1251 = vsel %vm989, %v1218, 0
        %v1253 = vsel %vm989, %v1220, 0
        %v1255 = vsel %vm989, %v1222, 0
        %v1257 = vsel %vm989, %v1224, 0
        %v1259 = vsel %vm989, %v1226, 0
        %1261 = vmatprep.subr.mxu0 0.0
        %1262 = vmatpush1.xpose.msra.mxu0 %v1229
        %1263 = vmatprep.subr.mxu0 0.0
        %1264 = vmatpush1.xpose.msra.mxu0 %v1231
        %1265 = vmatprep.subr.mxu0 0.0
        %1266 = vmatpush1.xpose.msra.mxu0 %v1233
        %1267 = vmatprep.subr.mxu0 0.0
        %1268 = vmatpush1.xpose.msra.mxu0 %v1235
        %1269 = vmatprep.subr.mxu0 0.0
        %1270 = vmatpush1.xpose.msra.mxu0 %v1237
        %1271 = vmatprep.subr.mxu0 0.0
        %1272 = vmatpush1.xpose.msra.mxu0 %v1239
        %1273 = vmatprep.subr.mxu0 0.0
        %1274 = vmatpush1.xpose.msra.mxu0 %v1241
        %1275 = vmatprep.subr.mxu0 0.0
        %1276 = vmatpush1.xpose.msra.mxu0 %v1243
        %1277 = vmatprep.subr.mxu0 0.0
        %1278 = vmatpush1.xpose.msra.mxu0 %v1245
        %1279 = vmatprep.subr.mxu0 0.0
        %1280 = vmatpush1.xpose.msra.mxu0 %v1247
        %1281 = vmatprep.subr.mxu0 0.0
        %1282 = vmatpush1.xpose.msra.mxu0 %v1249
        %1283 = vmatprep.subr.mxu0 0.0
        %1284 = vmatpush1.xpose.msra.mxu0 %v1251
        %1285 = vmatprep.subr.mxu0 0.0
        %1286 = vmatpush1.xpose.msra.mxu0 %v1253
        %1287 = vmatprep.subr.mxu0 0.0
        %1288 = vmatpush1.xpose.msra.mxu0 %v1255
        %1289 = vmatprep.subr.mxu0 0.0
        %1290 = vmatpush1.xpose.msra.mxu0 %v1257
        %1291 = vmatprep.subr.mxu0 0.0
        %1292 = vmatpush1.xpose.msra.mxu0 %v1259
        %1293 = vmatprep.subr.mxu0 0.0
        %1294 = vmatpush1.xpose.msra.mxu0 0.0
        %1295 = vmatprep.subr.mxu0 0.0
        %1296 = vmatpush1.xpose.msra.mxu0 0.0
        %1297 = vmatprep.subr.mxu0 0.0
        %1298 = vmatpush1.xpose.msra.mxu0 0.0
        %1299 = vmatprep.subr.mxu0 0.0
        %1300 = vmatpush1.xpose.msra.mxu0 0.0
        %1301 = vmatprep.subr.mxu0 0.0
        %1302 = vmatpush1.xpose.msra.mxu0 0.0
        %1303 = vmatprep.subr.mxu0 0.0
        %1304 = vmatpush1.xpose.msra.mxu0 0.0
        %1305 = vmatprep.subr.mxu0 0.0
        %1306 = vmatpush1.xpose.msra.mxu0 0.0
        %1307 = vmatprep.subr.mxu0 0.0
        %1308 = vmatpush1.xpose.msra.mxu0 0.0
        %1309 = vmatprep.subr.mxu0 0.0
        %1310 = vmatpush1.xpose.msra.mxu0 0.0
        %1311 = vmatprep.subr.mxu0 0.0
        %1312 = vmatpush1.xpose.msra.mxu0 0.0
        %1313 = vmatprep.subr.mxu0 0.0
        %1314 = vmatpush1.xpose.msra.mxu0 0.0
        %1315 = vmatprep.subr.mxu0 0.0
        %1316 = vmatpush1.xpose.msra.mxu0 0.0
        %1317 = vmatprep.subr.mxu0 0.0
        %1318 = vmatpush1.xpose.msra.mxu0 0.0
        %1319 = vmatprep.subr.mxu0 0.0
        %1320 = vmatpush1.xpose.msra.mxu0 0.0
        %1321 = vmatprep.subr.mxu0 0.0
        %1322 = vmatpush1.xpose.msra.mxu0 0.0
        %1323 = vmatprep.subr.mxu0 0.0
        %1324 = vmatpush1.xpose.msra.mxu0 0.0
        %1325 = vmatprep.mubr.f32.mxu0 0.0
        %1326 = vmatmul.mubr.f32.gmra.mrb[0].mxu0 %v1227
        %v1327 = vpop.f32.mrb[0].mxu0
        %v1328 = vadd.f32 0.0, %v1327
        %v1329 = vpop.f32.mrb[0].mxu0
        %1330 = vdwg.mxu0
        %v1331 = vsel %vm988, %v1328, -1e+30
        %1332 = vmax.xlane.f32.xlu0 %v1331
        %v1333 = vpop.xlane.xlu0 %1332
        %v1334 = vsub.f32 %v1331, %v1333
        %v1335 = vmul.f32 %v1334, 1.442695
        %v1336 = vpow.pop %v1335
        %1337 = vadd.xlane.f32.xlu0 %v1336
        %v1338 = vpop.xlane.xlu0 %1337
        %v1339 = vrcp.pop %v1338
        %v1340 = vmul.f32 %v1336, %v1339
        %v1341 = vadd.f32 %v1121, %v1340
        %1358 = vrot.lane.b32.xlu0 %v908, 120
        %v1359 = vpop.permute.xlu0 %1358
        %1360 = vrot.lane.b32.xlu0 %v913, 120
        %v1361 = vpop.permute.xlu0 %1360
        %1362 = vrot.lane.b32.xlu0 %v918, 120
        %v1363 = vpop.permute.xlu0 %1362
        %1364 = vrot.lane.b32.xlu0 %v923, 120
        %v1365 = vpop.permute.xlu0 %1364
        %1366 = vrot.lane.b32.xlu0 %v928, 120
        %v1367 = vpop.permute.xlu0 %1366
        %1368 = vrot.lane.b32.xlu0 %v933, 120
        %v1369 = vpop.permute.xlu0 %1368
        %1370 = vrot.lane.b32.xlu0 %v938, 120
        %v1371 = vpop.permute.xlu0 %1370
        %1372 = vrot.lane.b32.xlu0 %v943, 120
        %v1373 = vpop.permute.xlu0 %1372
        %1374 = vrot.lane.b32.xlu0 %v948, 120
        %v1375 = vpop.permute.xlu0 %1374
        %1376 = vrot.lane.b32.xlu0 %v953, 120
        %v1377 = vpop.permute.xlu0 %1376
        %1378 = vrot.lane.b32.xlu0 %v958, 120
        %v1379 = vpop.permute.xlu0 %1378
        %1380 = vrot.lane.b32.xlu0 %v963, 120
        %v1381 = vpop.permute.xlu0 %1380
        %1382 = vrot.lane.b32.xlu0 %v968, 120
        %v1383 = vpop.permute.xlu0 %1382
        %1384 = vrot.lane.b32.xlu0 %v973, 120
        %v1385 = vpop.permute.xlu0 %1384
        %1386 = vrot.lane.b32.xlu0 %v978, 120
        %v1387 = vpop.permute.xlu0 %1386
        %1388 = vrot.lane.b32.xlu0 %v983, 120
        %v1389 = vpop.permute.xlu0 %1388
        %1406 = vmatprep.subr.mxu0 0.0
        %1407 = vmatpush1.msra.mxu0 %v1359
        %1408 = vmatprep.subr.mxu0 0.0
        %1409 = vmatpush1.msra.mxu0 %v1361
        %1410 = vmatprep.subr.mxu0 0.0
        %1411 = vmatpush1.msra.mxu0 %v1363
        %1412 = vmatprep.subr.mxu0 0.0
        %1413 = vmatpush1.msra.mxu0 %v1365
        %1414 = vmatprep.subr.mxu0 0.0
        %1415 = vmatpush1.msra.mxu0 %v1367
        %1416 = vmatprep.subr.mxu0 0.0
        %1417 = vmatpush1.msra.mxu0 %v1369
        %1418 = vmatprep.subr.mxu0 0.0
        %1419 = vmatpush1.msra.mxu0 %v1371
        %1420 = vmatprep.subr.mxu0 0.0
        %1421 = vmatpush1.msra.mxu0 %v1373
        %1422 = vmatprep.subr.mxu0 0.0
        %1423 = vmatpush1.msra.mxu0 %v1375
        %1424 = vmatprep.subr.mxu0 0.0
        %1425 = vmatpush1.msra.mxu0 %v1377
        %1426 = vmatprep.subr.mxu0 0.0
        %1427 = vmatpush1.msra.mxu0 %v1379
        %1428 = vmatprep.subr.mxu0 0.0
        %1429 = vmatpush1.msra.mxu0 %v1381
        %1430 = vmatprep.subr.mxu0 0.0
        %1431 = vmatpush1.msra.mxu0 %v1383
        %1432 = vmatprep.subr.mxu0 0.0
        %1433 = vmatpush1.msra.mxu0 %v1385
        %1434 = vmatprep.subr.mxu0 0.0
        %1435 = vmatpush1.msra.mxu0 %v1387
        %1436 = vmatprep.subr.mxu0 0.0
        %1437 = vmatpush1.msra.mxu0 %v1389
        %1438 = vmatprep.subr.mxu0 0.0
        %1439 = vmatpush1.msra.mxu0 0.0
        %1440 = vmatprep.subr.mxu0 0.0
        %1441 = vmatpush1.msra.mxu0 0.0
        %1442 = vmatprep.subr.mxu0 0.0
        %1443 = vmatpush1.msra.mxu0 0.0
        %1444 = vmatprep.subr.mxu0 0.0
        %1445 = vmatpush1.msra.mxu0 0.0
        %1446 = vmatprep.subr.mxu0 0.0
        %1447 = vmatpush1.msra.mxu0 0.0
        %1448 = vmatprep.subr.mxu0 0.0
        %1449 = vmatpush1.msra.mxu0 0.0
        %1450 = vmatprep.subr.mxu0 0.0
        %1451 = vmatpush1.msra.mxu0 0.0
        %1452 = vmatprep.subr.mxu0 0.0
        %1453 = vmatpush1.msra.mxu0 0.0
        %1454 = vmatprep.subr.mxu0 0.0
        %1455 = vmatpush1.msra.mxu0 0.0
        %1456 = vmatprep.subr.mxu0 0.0
        %1457 = vmatpush1.msra.mxu0 0.0
        %1458 = vmatprep.subr.mxu0 0.0
        %1459 = vmatpush1.msra.mxu0 0.0
        %1460 = vmatprep.subr.mxu0 0.0
        %1461 = vmatpush1.msra.mxu0 0.0
        %1462 = vmatprep.subr.mxu0 0.0
        %1463 = vmatpush1.msra.mxu0 0.0
        %1464 = vmatprep.subr.mxu0 0.0
        %1465 = vmatpush1.msra.mxu0 0.0
        %1466 = vmatprep.subr.mxu0 0.0
        %1467 = vmatpush1.msra.mxu0 0.0
        %1468 = vmatprep.subr.mxu0 0.0
        %1469 = vmatpush1.msra.mxu0 0.0
        %1470 = vmatprep.mubr.f32.mxu0 0.0
        %1471 = vmatmul.mubr.f32.gmra.mrb[0].mxu0 %v1340
        %v1472 = vpop.f32.mrb[0].mxu0
        %v1473 = vadd.f32 0.0, %v1472
        %v1474 = vpop.f32.mrb[0].mxu0
        %1475 = vdwg.mxu0
        %s1476 = scalar_lea.vmem %s9, 8
        %v1477 = vld [vmem:[%s1476] sm:$0xff]
        %v1479 = vsel %vm989, %v1473, 0
        %1481 = vmatprep.subr.mxu0 0.0
        %1482 = vmatpush1.msra.mxu0 %v1477
        %1483 = vmatprep.subr.mxu0 0.0
        %1484 = vmatpush1.msra.mxu0 0.0
        %1485 = vmatprep.subr.mxu0 0.0
        %1486 = vmatpush1.msra.mxu0 0.0
        %1487 = vmatprep.subr.mxu0 0.0
        %1488 = vmatpush1.msra.mxu0 0.0
        %1489 = vmatprep.subr.mxu0 0.0
        %1490 = vmatpush1.msra.mxu0 0.0
        %1491 = vmatprep.subr.mxu0 0.0
        %1492 = vmatpush1.msra.mxu0 0.0
        %1493 = vmatprep.subr.mxu0 0.0
        %1494 = vmatpush1.msra.mxu0 0.0
        %1495 = vmatprep.subr.mxu0 0.0
        %1496 = vmatpush1.msra.mxu0 0.0
        %1497 = vmatprep.subr.mxu0 0.0
        %1498 = vmatpush1.msra.mxu0 0.0
        %1499 = vmatprep.subr.mxu0 0.0
        %1500 = vmatpush1.msra.mxu0 0.0
        %1501 = vmatprep.subr.mxu0 0.0
        %1502 = vmatpush1.msra.mxu0 0.0
        %1503 = vmatprep.subr.mxu0 0.0
        %1504 = vmatpush1.msra.mxu0 0.0
        %1505 = vmatprep.subr.mxu0 0.0
        %1506 = vmatpush1.msra.mxu0 0.0
        %1507 = vmatprep.subr.mxu0 0.0
        %1508 = vmatpush1.msra.mxu0 0.0
        %1509 = vmatprep.subr.mxu0 0.0
        %1510 = vmatpush1.msra.mxu0 0.0
        %1511 = vmatprep.subr.mxu0 0.0
        %1512 = vmatpush1.msra.mxu0 0.0
        %1513 = vmatprep.subr.mxu0 0.0
        %1514 = vmatpush1.msra.mxu0 0.0
        %1515 = vmatprep.subr.mxu0 0.0
        %1516 = vmatpush1.msra.mxu0 0.0
        %1517 = vmatprep.subr.mxu0 0.0
        %1518 = vmatpush1.msra.mxu0 0.0
        %1519 = vmatprep.subr.mxu0 0.0
        %1520 = vmatpush1.msra.mxu0 0.0
        %1521 = vmatprep.subr.mxu0 0.0
        %1522 = vmatpush1.msra.mxu0 0.0
        %1523 = vmatprep.subr.mxu0 0.0
        %1524 = vmatpush1.msra.mxu0 0.0
        %1525 = vmatprep.subr.mxu0 0.0
        %1526 = vmatpush1.msra.mxu0 0.0
        %1527 = vmatprep.subr.mxu0 0.0
        %1528 = vmatpush1.msra.mxu0 0.0
        %1529 = vmatprep.subr.mxu0 0.0
        %1530 = vmatpush1.msra.mxu0 0.0
        %1531 = vmatprep.subr.mxu0 0.0
        %1532 = vmatpush1.msra.mxu0 0.0
        %1533 = vmatprep.subr.mxu0 0.0
        %1534 = vmatpush1.msra.mxu0 0.0
        %1535 = vmatprep.subr.mxu0 0.0
        %1536 = vmatpush1.msra.mxu0 0.0
        %1537 = vmatprep.subr.mxu0 0.0
        %1538 = vmatpush1.msra.mxu0 0.0
        %1539 = vmatprep.subr.mxu0 0.0
        %1540 = vmatpush1.msra.mxu0 0.0
        %1541 = vmatprep.subr.mxu0 0.0
        %1542 = vmatpush1.msra.mxu0 0.0
        %1543 = vmatprep.subr.mxu0 0.0
        %1544 = vmatpush1.msra.mxu0 0.0
        %1545 = vmatprep.mubr.f32.mxu0 0.0
        %1546 = vmatmul.mubr.f32.gmra.mrb[0].mxu0 %v1479
        %v1547 = vpop.f32.mrb[0].mxu0
        %v1548 = vadd.f32 0.0, %v1547
        %v1549 = vpop.f32.mrb[0].mxu0
        %1550 = vdwg.mxu0
        %v1552 = vsel %vm989, %v1189, 0
        %1554 = vmatprep.subr.mxu0 0.0
        %1555 = vmatpush1.msra.mxu0 %v1192
        %1556 = vmatprep.subr.mxu0 0.0
        %1557 = vmatpush1.msra.mxu0 0.0
        %1558 = vmatprep.subr.mxu0 0.0
        %1559 = vmatpush1.msra.mxu0 0.0
        %1560 = vmatprep.subr.mxu0 0.0
        %1561 = vmatpush1.msra.mxu0 0.0
        %1562 = vmatprep.subr.mxu0 0.0
        %1563 = vmatpush1.msra.mxu0 0.0
        %1564 = vmatprep.subr.mxu0 0.0
        %1565 = vmatpush1.msra.mxu0 0.0
        %1566 = vmatprep.subr.mxu0 0.0
        %1567 = vmatpush1.msra.mxu0 0.0
        %1568 = vmatprep.subr.mxu0 0.0
        %1569 = vmatpush1.msra.mxu0 0.0
        %1570 = vmatprep.subr.mxu0 0.0
        %1571 = vmatpush1.msra.mxu0 0.0
        %1572 = vmatprep.subr.mxu0 0.0
        %1573 = vmatpush1.msra.mxu0 0.0
        %1574 = vmatprep.subr.mxu0 0.0
        %1575 = vmatpush1.msra.mxu0 0.0
        %1576 = vmatprep.subr.mxu0 0.0
        %1577 = vmatpush1.msra.mxu0 0.0
        %1578 = vmatprep.subr.mxu0 0.0
        %1579 = vmatpush1.msra.mxu0 0.0
        %1580 = vmatprep.subr.mxu0 0.0
        %1581 = vmatpush1.msra.mxu0 0.0
        %1582 = vmatprep.subr.mxu0 0.0
        %1583 = vmatpush1.msra.mxu0 0.0
        %1584 = vmatprep.subr.mxu0 0.0
        %1585 = vmatpush1.msra.mxu0 0.0
        %1586 = vmatprep.subr.mxu0 0.0
        %1587 = vmatpush1.msra.mxu0 0.0
        %1588 = vmatprep.subr.mxu0 0.0
        %1589 = vmatpush1.msra.mxu0 0.0
        %1590 = vmatprep.subr.mxu0 0.0
        %1591 = vmatpush1.msra.mxu0 0.0
        %1592 = vmatprep.subr.mxu0 0.0
        %1593 = vmatpush1.msra.mxu0 0.0
        %1594 = vmatprep.subr.mxu0 0.0
        %1595 = vmatpush1.msra.mxu0 0.0
        %1596 = vmatprep.subr.mxu0 0.0
        %1597 = vmatpush1.msra.mxu0 0.0
        %1598 = vmatprep.subr.mxu0 0.0
        %1599 = vmatpush1.msra.mxu0 0.0
        %1600 = vmatprep.subr.mxu0 0.0
        %1601 = vmatpush1.msra.mxu0 0.0
        %1602 = vmatprep.subr.mxu0 0.0
        %1603 = vmatpush1.msra.mxu0 0.0
        %1604 = vmatprep.subr.mxu0 0.0
        %1605 = vmatpush1.msra.mxu0 0.0
        %1606 = vmatprep.subr.mxu0 0.0
        %1607 = vmatpush1.msra.mxu0 0.0
        %1608 = vmatprep.subr.mxu0 0.0
        %1609 = vmatpush1.msra.mxu0 0.0
        %1610 = vmatprep.subr.mxu0 0.0
        %1611 = vmatpush1.msra.mxu0 0.0
        %1612 = vmatprep.subr.mxu0 0.0
        %1613 = vmatpush1.msra.mxu0 0.0
        %1614 = vmatprep.subr.mxu0 0.0
        %1615 = vmatpush1.msra.mxu0 0.0
        %1616 = vmatprep.subr.mxu0 0.0
        %1617 = vmatpush1.msra.mxu0 0.0
        %1618 = vmatprep.mubr.f32.mxu0 0.0
        %1619 = vmatmul.mubr.f32.gmra.mrb[0].mxu0 %v1552
        %v1620 = vpop.f32.mrb[0].mxu0
        %v1621 = vadd.f32 %v1548, %v1620
        %v1622 = vpop.f32.mrb[0].mxu0
        %1623 = vdwg.mxu0
        %1624 = vrot.lane.b32.xlu0 %v575, 112
        %v1625 = vpop.permute.xlu0 %1624
        %1626 = vrot.lane.b32.xlu0 %v704, 112
        %v1627 = vpop.permute.xlu0 %1626
        %1628 = vrot.lane.b32.xlu0 %v709, 112
        %v1629 = vpop.permute.xlu0 %1628
        %1630 = vrot.lane.b32.xlu0 %v714, 112
        %v1631 = vpop.permute.xlu0 %1630
        %1632 = vrot.lane.b32.xlu0 %v719, 112
        %v1633 = vpop.permute.xlu0 %1632
        %1634 = vrot.lane.b32.xlu0 %v724, 112
        %v1635 = vpop.permute.xlu0 %1634
        %1636 = vrot.lane.b32.xlu0 %v729, 112
        %v1637 = vpop.permute.xlu0 %1636
        %1638 = vrot.lane.b32.xlu0 %v734, 112
        %v1639 = vpop.permute.xlu0 %1638
        %1640 = vrot.lane.b32.xlu0 %v739, 112
        %v1641 = vpop.permute.xlu0 %1640
        %1642 = vrot.lane.b32.xlu0 %v744, 112
        %v1643 = vpop.permute.xlu0 %1642
        %1644 = vrot.lane.b32.xlu0 %v749, 112
        %v1645 = vpop.permute.xlu0 %1644
        %1646 = vrot.lane.b32.xlu0 %v754, 112
        %v1647 = vpop.permute.xlu0 %1646
        %1648 = vrot.lane.b32.xlu0 %v759, 112
        %v1649 = vpop.permute.xlu0 %1648
        %1650 = vrot.lane.b32.xlu0 %v764, 112
        %v1651 = vpop.permute.xlu0 %1650
        %1652 = vrot.lane.b32.xlu0 %v769, 112
        %v1653 = vpop.permute.xlu0 %1652
        %1654 = vrot.lane.b32.xlu0 %v774, 112
        %v1655 = vpop.permute.xlu0 %1654
        %1656 = vrot.lane.b32.xlu0 %v779, 112
        %v1657 = vpop.permute.xlu0 %1656
        %v1658 = vsel %vm989, %v1625, 0
        %v1660 = vsel %vm989, %v1627, 0
        %v1662 = vsel %vm989, %v1629, 0
        %v1664 = vsel %vm989, %v1631, 0
        %v1666 = vsel %vm989, %v1633, 0
        %v1668 = vsel %vm989, %v1635, 0
        %v1670 = vsel %vm989, %v1637, 0
        %v1672 = vsel %vm989, %v1639, 0
        %v1674 = vsel %vm989, %v1641, 0
        %v1676 = vsel %vm989, %v1643, 0
        %v1678 = vsel %vm989, %v1645, 0
        %v1680 = vsel %vm989, %v1647, 0
        %v1682 = vsel %vm989, %v1649, 0
        %v1684 = vsel %vm989, %v1651, 0
        %v1686 = vsel %vm989, %v1653, 0
        %v1688 = vsel %vm989, %v1655, 0
        %v1690 = vsel %vm989, %v1657, 0
        %1692 = vmatprep.subr.mxu0 0.0
        %1693 = vmatpush1.xpose.msra.mxu0 %v1660
        %1694 = vmatprep.subr.mxu0 0.0
        %1695 = vmatpush1.xpose.msra.mxu0 %v1662
        %1696 = vmatprep.subr.mxu0 0.0
        %1697 = vmatpush1.xpose.msra.mxu0 %v1664
        %1698 = vmatprep.subr.mxu0 0.0
        %1699 = vmatpush1.xpose.msra.mxu0 %v1666
        %1700 = vmatprep.subr.mxu0 0.0
        %1701 = vmatpush1.xpose.msra.mxu0 %v1668
        %1702 = vmatprep.subr.mxu0 0.0
        %1703 = vmatpush1.xpose.msra.mxu0 %v1670
        %1704 = vmatprep.subr.mxu0 0.0
        %1705 = vmatpush1.xpose.msra.mxu0 %v1672
        %1706 = vmatprep.subr.mxu0 0.0
        %1707 = vmatpush1.xpose.msra.mxu0 %v1674
        %1708 = vmatprep.subr.mxu0 0.0
        %1709 = vmatpush1.xpose.msra.mxu0 %v1676
        %1710 = vmatprep.subr.mxu0 0.0
        %1711 = vmatpush1.xpose.msra.mxu0 %v1678
        %1712 = vmatprep.subr.mxu0 0.0
        %1713 = vmatpush1.xpose.msra.mxu0 %v1680
        %1714 = vmatprep.subr.mxu0 0.0
        %1715 = vmatpush1.xpose.msra.mxu0 %v1682
        %1716 = vmatprep.subr.mxu0 0.0
        %1717 = vmatpush1.xpose.msra.mxu0 %v1684
        %1718 = vmatprep.subr.mxu0 0.0
        %1719 = vmatpush1.xpose.msra.mxu0 %v1686
        %1720 = vmatprep.subr.mxu0 0.0
        %1721 = vmatpush1.xpose.msra.mxu0 %v1688
        %1722 = vmatprep.subr.mxu0 0.0
        %1723 = vmatpush1.xpose.msra.mxu0 %v1690
        %1724 = vmatprep.subr.mxu0 0.0
        %1725 = vmatpush1.xpose.msra.mxu0 0.0
        %1726 = vmatprep.subr.mxu0 0.0
        %1727 = vmatpush1.xpose.msra.mxu0 0.0
        %1728 = vmatprep.subr.mxu0 0.0
        %1729 = vmatpush1.xpose.msra.mxu0 0.0
        %1730 = vmatprep.subr.mxu0 0.0
        %1731 = vmatpush1.xpose.msra.mxu0 0.0
        %1732 = vmatprep.subr.mxu0 0.0
        %1733 = vmatpush1.xpose.msra.mxu0 0.0
        %1734 = vmatprep.subr.mxu0 0.0
        %1735 = vmatpush1.xpose.msra.mxu0 0.0
        %1736 = vmatprep.subr.mxu0 0.0
        %1737 = vmatpush1.xpose.msra.mxu0 0.0
        %1738 = vmatprep.subr.mxu0 0.0
        %1739 = vmatpush1.xpose.msra.mxu0 0.0
        %1740 = vmatprep.subr.mxu0 0.0
        %1741 = vmatpush1.xpose.msra.mxu0 0.0
        %1742 = vmatprep.subr.mxu0 0.0
        %1743 = vmatpush1.xpose.msra.mxu0 0.0
        %1744 = vmatprep.subr.mxu0 0.0
        %1745 = vmatpush1.xpose.msra.mxu0 0.0
        %1746 = vmatprep.subr.mxu0 0.0
        %1747 = vmatpush1.xpose.msra.mxu0 0.0
        %1748 = vmatprep.subr.mxu0 0.0
        %1749 = vmatpush1.xpose.msra.mxu0 0.0
        %1750 = vmatprep.subr.mxu0 0.0
        %1751 = vmatpush1.xpose.msra.mxu0 0.0
        %1752 = vmatprep.subr.mxu0 0.0
        %1753 = vmatpush1.xpose.msra.mxu0 0.0
        %1754 = vmatprep.subr.mxu0 0.0
        %1755 = vmatpush1.xpose.msra.mxu0 0.0
        %1756 = vmatprep.mubr.f32.mxu0 0.0
        %1757 = vmatmul.mubr.f32.gmra.mrb[0].mxu0 %v1658
        %v1758 = vpop.f32.mrb[0].mxu0
        %v1759 = vadd.f32 0.0, %v1758
        %v1760 = vpop.f32.mrb[0].mxu0
        %1761 = vdwg.mxu0
        %v1762 = vsel %vm988, %v1759, -1e+30
        %1763 = vmax.xlane.f32.xlu0 %v1762
        %v1764 = vpop.xlane.xlu0 %1763
        %v1765 = vsub.f32 %v1762, %v1764
        %v1766 = vmul.f32 %v1765, 1.442695
        %v1767 = vpow.pop %v1766
        %1768 = vadd.xlane.f32.xlu0 %v1767
        %v1769 = vpop.xlane.xlu0 %1768
        %v1770 = vrcp.pop %v1769
        %v1771 = vmul.f32 %v1767, %v1770
        %v1772 = vadd.f32 %v1341, %v1771
        %1773 = vrot.lane.b32.xlu0 %v908, 112
        %v1774 = vpop.permute.xlu0 %1773
        %1775 = vrot.lane.b32.xlu0 %v913, 112
        %v1776 = vpop.permute.xlu0 %1775
        %1777 = vrot.lane.b32.xlu0 %v918, 112
        %v1778 = vpop.permute.xlu0 %1777
        %1779 = vrot.lane.b32.xlu0 %v923, 112
        %v1780 = vpop.permute.xlu0 %1779
        %1781 = vrot.lane.b32.xlu0 %v928, 112
        %v1782 = vpop.permute.xlu0 %1781
        %1783 = vrot.lane.b32.xlu0 %v933, 112
        %v1784 = vpop.permute.xlu0 %1783
        %1785 = vrot.lane.b32.xlu0 %v938, 112
        %v1786 = vpop.permute.xlu0 %1785
        %1787 = vrot.lane.b32.xlu0 %v943, 112
        %v1788 = vpop.permute.xlu0 %1787
        %1789 = vrot.lane.b32.xlu0 %v948, 112
        %v1790 = vpop.permute.xlu0 %1789
        %1791 = vrot.lane.b32.xlu0 %v953, 112
        %v1792 = vpop.permute.xlu0 %1791
        %1793 = vrot.lane.b32.xlu0 %v958, 112
        %v1794 = vpop.permute.xlu0 %1793
        %1795 = vrot.lane.b32.xlu0 %v963, 112
        %v1796 = vpop.permute.xlu0 %1795
        %1797 = vrot.lane.b32.xlu0 %v968, 112
        %v1798 = vpop.permute.xlu0 %1797
        %1799 = vrot.lane.b32.xlu0 %v973, 112
        %v1800 = vpop.permute.xlu0 %1799
        %1801 = vrot.lane.b32.xlu0 %v978, 112
        %v1802 = vpop.permute.xlu0 %1801
        %1803 = vrot.lane.b32.xlu0 %v983, 112
        %v1804 = vpop.permute.xlu0 %1803
        %1821 = vmatprep.subr.mxu0 0.0
        %1822 = vmatpush1.msra.mxu0 %v1774
        %1823 = vmatprep.subr.mxu0 0.0
        %1824 = vmatpush1.msra.mxu0 %v1776
        %1825 = vmatprep.subr.mxu0 0.0
        %1826 = vmatpush1.msra.mxu0 %v1778
        %1827 = vmatprep.subr.mxu0 0.0
        %1828 = vmatpush1.msra.mxu0 %v1780
        %1829 = vmatprep.subr.mxu0 0.0
        %1830 = vmatpush1.msra.mxu0 %v1782
        %1831 = vmatprep.subr.mxu0 0.0
        %1832 = vmatpush1.msra.mxu0 %v1784
        %1833 = vmatprep.subr.mxu0 0.0
        %1834 = vmatpush1.msra.mxu0 %v1786
        %1835 = vmatprep.subr.mxu0 0.0
        %1836 = vmatpush1.msra.mxu0 %v1788
        %1837 = vmatprep.subr.mxu0 0.0
        %1838 = vmatpush1.msra.mxu0 %v1790
        %1839 = vmatprep.subr.mxu0 0.0
        %1840 = vmatpush1.msra.mxu0 %v1792
        %1841 = vmatprep.subr.mxu0 0.0
        %1842 = vmatpush1.msra.mxu0 %v1794
        %1843 = vmatprep.subr.mxu0 0.0
        %1844 = vmatpush1.msra.mxu0 %v1796
        %1845 = vmatprep.subr.mxu0 0.0
        %1846 = vmatpush1.msra.mxu0 %v1798
        %1847 = vmatprep.subr.mxu0 0.0
        %1848 = vmatpush1.msra.mxu0 %v1800
        %1849 = vmatprep.subr.mxu0 0.0
        %1850 = vmatpush1.msra.mxu0 %v1802
        %1851 = vmatprep.subr.mxu0 0.0
        %1852 = vmatpush1.msra.mxu0 %v1804
        %1853 = vmatprep.subr.mxu0 0.0
        %1854 = vmatpush1.msra.mxu0 0.0
        %1855 = vmatprep.subr.mxu0 0.0
        %1856 = vmatpush1.msra.mxu0 0.0
        %1857 = vmatprep.subr.mxu0 0.0
        %1858 = vmatpush1.msra.mxu0 0.0
        %1859 = vmatprep.subr.mxu0 0.0
        %1860 = vmatpush1.msra.mxu0 0.0
        %1861 = vmatprep.subr.mxu0 0.0
        %1862 = vmatpush1.msra.mxu0 0.0
        %1863 = vmatprep.subr.mxu0 0.0
        %1864 = vmatpush1.msra.mxu0 0.0
        %1865 = vmatprep.subr.mxu0 0.0
        %1866 = vmatpush1.msra.mxu0 0.0
        %1867 = vmatprep.subr.mxu0 0.0
        %1868 = vmatpush1.msra.mxu0 0.0
        %1869 = vmatprep.subr.mxu0 0.0
        %1870 = vmatpush1.msra.mxu0 0.0
        %1871 = vmatprep.subr.mxu0 0.0
        %1872 = vmatpush1.msra.mxu0 0.0
        %1873 = vmatprep.subr.mxu0 0.0
        %1874 = vmatpush1.msra.mxu0 0.0
        %1875 = vmatprep.subr.mxu0 0.0
        %1876 = vmatpush1.msra.mxu0 0.0
        %1877 = vmatprep.subr.mxu0 0.0
        %1878 = vmatpush1.msra.mxu0 0.0
        %1879 = vmatprep.subr.mxu0 0.0
        %1880 = vmatpush1.msra.mxu0 0.0
        %1881 = vmatprep.subr.mxu0 0.0
        %1882 = vmatpush1.msra.mxu0 0.0
        %1883 = vmatprep.subr.mxu0 0.0
        %1884 = vmatpush1.msra.mxu0 0.0
        %1885 = vmatprep.mubr.f32.mxu0 0.0
        %1886 = vmatmul.mubr.f32.gmra.mrb[0].mxu0 %v1771
        %v1887 = vpop.f32.mrb[0].mxu0
        %v1888 = vadd.f32 0.0, %v1887
        %v1889 = vpop.f32.mrb[0].mxu0
        %1890 = vdwg.mxu0
        %s1891 = scalar_lea.vmem %s9, 16
        %v1892 = vld [vmem:[%s1891] sm:$0xff]
        %v1894 = vsel %vm989, %v1888, 0
        %1896 = vmatprep.subr.mxu0 0.0
        %1897 = vmatpush1.msra.mxu0 %v1892
        %1898 = vmatprep.subr.mxu0 0.0
        %1899 = vmatpush1.msra.mxu0 0.0
        %1900 = vmatprep.subr.mxu0 0.0
        %1901 = vmatpush1.msra.mxu0 0.0
        %1902 = vmatprep.subr.mxu0 0.0
        %1903 = vmatpush1.msra.mxu0 0.0
        %1904 = vmatprep.subr.mxu0 0.0
        %1905 = vmatpush1.msra.mxu0 0.0
        %1906 = vmatprep.subr.mxu0 0.0
        %1907 = vmatpush1.msra.mxu0 0.0
        %1908 = vmatprep.subr.mxu0 0.0
        %1909 = vmatpush1.msra.mxu0 0.0
        %1910 = vmatprep.subr.mxu0 0.0
        %1911 = vmatpush1.msra.mxu0 0.0
        %1912 = vmatprep.subr.mxu0 0.0
        %1913 = vmatpush1.msra.mxu0 0.0
        %1914 = vmatprep.subr.mxu0 0.0
        %1915 = vmatpush1.msra.mxu0 0.0
        %1916 = vmatprep.subr.mxu0 0.0
        %1917 = vmatpush1.msra.mxu0 0.0
        %1918 = vmatprep.subr.mxu0 0.0
        %1919 = vmatpush1.msra.mxu0 0.0
        %1920 = vmatprep.subr.mxu0 0.0
        %1921 = vmatpush1.msra.mxu0 0.0
        %1922 = vmatprep.subr.mxu0 0.0
        %1923 = vmatpush1.msra.mxu0 0.0
        %1924 = vmatprep.subr.mxu0 0.0
        %1925 = vmatpush1.msra.mxu0 0.0
        %1926 = vmatprep.subr.mxu0 0.0
        %1927 = vmatpush1.msra.mxu0 0.0
        %1928 = vmatprep.subr.mxu0 0.0
        %1929 = vmatpush1.msra.mxu0 0.0
        %1930 = vmatprep.subr.mxu0 0.0
        %1931 = vmatpush1.msra.mxu0 0.0
        %1932 = vmatprep.subr.mxu0 0.0
        %1933 = vmatpush1.msra.mxu0 0.0
        %1934 = vmatprep.subr.mxu0 0.0
        %1935 = vmatpush1.msra.mxu0 0.0
        %1936 = vmatprep.subr.mxu0 0.0
        %1937 = vmatpush1.msra.mxu0 0.0
        %1938 = vmatprep.subr.mxu0 0.0
        %1939 = vmatpush1.msra.mxu0 0.0
        %1940 = vmatprep.subr.mxu0 0.0
        %1941 = vmatpush1.msra.mxu0 0.0
        %1942 = vmatprep.subr.mxu0 0.0
        %1943 = vmatpush1.msra.mxu0 0.0
        %1944 = vmatprep.subr.mxu0 0.0
        %1945 = vmatpush1.msra.mxu0 0.0
        %1946 = vmatprep.subr.mxu0 0.0
        %1947 = vmatpush1.msra.mxu0 0.0
        %1948 = vmatprep.subr.mxu0 0.0
        %1949 = vmatpush1.msra.mxu0 0.0
        %1950 = vmatprep.subr.mxu0 0.0
        %1951 = vmatpush1.msra.mxu0 0.0
        %1952 = vmatprep.subr.mxu0 0.0
        %1953 = vmatpush1.msra.mxu0 0.0
        %1954 = vmatprep.subr.mxu0 0.0
        %1955 = vmatpush1.msra.mxu0 0.0
        %1956 = vmatprep.subr.mxu0 0.0
        %1957 = vmatpush1.msra.mxu0 0.0
        %1958 = vmatprep.subr.mxu0 0.0
        %1959 = vmatpush1.msra.mxu0 0.0
        %1960 = vmatprep.mubr.f32.mxu0 0.0
        %1961 = vmatmul.mubr.f32.gmra.mrb[0].mxu0 %v1894
        %v1962 = vpop.f32.mrb[0].mxu0
        %v1963 = vadd.f32 0.0, %v1962
        %v1964 = vpop.f32.mrb[0].mxu0
        %1965 = vdwg.mxu0
        %v1966 = vadd.f32 %v1621, %v1963
        %1967 = vrot.lane.b32.xlu0 %v575, 104
        %v1968 = vpop.permute.xlu0 %1967
        %1969 = vrot.lane.b32.xlu0 %v704, 104
        %v1970 = vpop.permute.xlu0 %1969
        %1971 = vrot.lane.b32.xlu0 %v709, 104
        %v1972 = vpop.permute.xlu0 %1971
        %1973 = vrot.lane.b32.xlu0 %v714, 104
        %v1974 = vpop.permute.xlu0 %1973
        %1975 = vrot.lane.b32.xlu0 %v719, 104
        %v1976 = vpop.permute.xlu0 %1975
        %1977 = vrot.lane.b32.xlu0 %v724, 104
        %v1978 = vpop.permute.xlu0 %1977
        %1979 = vrot.lane.b32.xlu0 %v729, 104
        %v1980 = vpop.permute.xlu0 %1979
        %1981 = vrot.lane.b32.xlu0 %v734, 104
        %v1982 = vpop.permute.xlu0 %1981
        %1983 = vrot.lane.b32.xlu0 %v739, 104
        %v1984 = vpop.permute.xlu0 %1983
        %1985 = vrot.lane.b32.xlu0 %v744, 104
        %v1986 = vpop.permute.xlu0 %1985
        %1987 = vrot.lane.b32.xlu0 %v749, 104
        %v1988 = vpop.permute.xlu0 %1987
        %1989 = vrot.lane.b32.xlu0 %v754, 104
        %v1990 = vpop.permute.xlu0 %1989
        %1991 = vrot.lane.b32.xlu0 %v759, 104
        %v1992 = vpop.permute.xlu0 %1991
        %1993 = vrot.lane.b32.xlu0 %v764, 104
        %v1994 = vpop.permute.xlu0 %1993
        %1995 = vrot.lane.b32.xlu0 %v769, 104
        %v1996 = vpop.permute.xlu0 %1995
        %1997 = vrot.lane.b32.xlu0 %v774, 104
        %v1998 = vpop.permute.xlu0 %1997
        %1999 = vrot.lane.b32.xlu0 %v779, 104
        %v2000 = vpop.permute.xlu0 %1999
        %v2001 = vsel %vm989, %v1968, 0
        %v2003 = vsel %vm989, %v1970, 0
        %v2005 = vsel %vm989, %v1972, 0
        %v2007 = vsel %vm989, %v1974, 0
        %v2009 = vsel %vm989, %v1976, 0
        %v2011 = vsel %vm989, %v1978, 0
        %v2013 = vsel %vm989, %v1980, 0
        %v2015 = vsel %vm989, %v1982, 0
        %v2017 = vsel %vm989, %v1984, 0
        %v2019 = vsel %vm989, %v1986, 0
        %v2021 = vsel %vm989, %v1988, 0
        %v2023 = vsel %vm989, %v1990, 0
        %v2025 = vsel %vm989, %v1992, 0
        %v2027 = vsel %vm989, %v1994, 0
        %v2029 = vsel %vm989, %v1996, 0
        %v2031 = vsel %vm989, %v1998, 0
        %v2033 = vsel %vm989, %v2000, 0
        %2035 = vmatprep.subr.mxu0 0.0
        %2036 = vmatpush1.xpose.msra.mxu0 %v2003
        %2037 = vmatprep.subr.mxu0 0.0
        %2038 = vmatpush1.xpose.msra.mxu0 %v2005
        %2039 = vmatprep.subr.mxu0 0.0
        %2040 = vmatpush1.xpose.msra.mxu0 %v2007
        %2041 = vmatprep.subr.mxu0 0.0
        %2042 = vmatpush1.xpose.msra.mxu0 %v2009
        %2043 = vmatprep.subr.mxu0 0.0
        %2044 = vmatpush1.xpose.msra.mxu0 %v2011
        %2045 = vmatprep.subr.mxu0 0.0
        %2046 = vmatpush1.xpose.msra.mxu0 %v2013
        %2047 = vmatprep.subr.mxu0 0.0
        %2048 = vmatpush1.xpose.msra.mxu0 %v2015
        %2049 = vmatprep.subr.mxu0 0.0
        %2050 = vmatpush1.xpose.msra.mxu0 %v2017
        %2051 = vmatprep.subr.mxu0 0.0
        %2052 = vmatpush1.xpose.msra.mxu0 %v2019
        %2053 = vmatprep.subr.mxu0 0.0
        %2054 = vmatpush1.xpose.msra.mxu0 %v2021
        %2055 = vmatprep.subr.mxu0 0.0
        %2056 = vmatpush1.xpose.msra.mxu0 %v2023
        %2057 = vmatprep.subr.mxu0 0.0
        %2058 = vmatpush1.xpose.msra.mxu0 %v2025
        %2059 = vmatprep.subr.mxu0 0.0
        %2060 = vmatpush1.xpose.msra.mxu0 %v2027
        %2061 = vmatprep.subr.mxu0 0.0
        %2062 = vmatpush1.xpose.msra.mxu0 %v2029
        %2063 = vmatprep.subr.mxu0 0.0
        %2064 = vmatpush1.xpose.msra.mxu0 %v2031
        %2065 = vmatprep.subr.mxu0 0.0
        %2066 = vmatpush1.xpose.msra.mxu0 %v2033
        %2067 = vmatprep.subr.mxu0 0.0
        %2068 = vmatpush1.xpose.msra.mxu0 0.0
        %2069 = vmatprep.subr.mxu0 0.0
        %2070 = vmatpush1.xpose.msra.mxu0 0.0
        %2071 = vmatprep.subr.mxu0 0.0
        %2072 = vmatpush1.xpose.msra.mxu0 0.0
        %2073 = vmatprep.subr.mxu0 0.0
        %2074 = vmatpush1.xpose.msra.mxu0 0.0
        %2075 = vmatprep.subr.mxu0 0.0
        %2076 = vmatpush1.xpose.msra.mxu0 0.0
        %2077 = vmatprep.subr.mxu0 0.0
        %2078 = vmatpush1.xpose.msra.mxu0 0.0
        %2079 = vmatprep.subr.mxu0 0.0
        %2080 = vmatpush1.xpose.msra.mxu0 0.0
        %2081 = vmatprep.subr.mxu0 0.0
        %2082 = vmatpush1.xpose.msra.mxu0 0.0
        %2083 = vmatprep.subr.mxu0 0.0
        %2084 = vmatpush1.xpose.msra.mxu0 0.0
        %2085 = vmatprep.subr.mxu0 0.0
        %2086 = vmatpush1.xpose.msra.mxu0 0.0
        %2087 = vmatprep.subr.mxu0 0.0
        %2088 = vmatpush1.xpose.msra.mxu0 0.0
        %2089 = vmatprep.subr.mxu0 0.0
        %2090 = vmatpush1.xpose.msra.mxu0 0.0
        %2091 = vmatprep.subr.mxu0 0.0
        %2092 = vmatpush1.xpose.msra.mxu0 0.0
        %2093 = vmatprep.subr.mxu0 0.0
        %2094 = vmatpush1.xpose.msra.mxu0 0.0
        %2095 = vmatprep.subr.mxu0 0.0
        %2096 = vmatpush1.xpose.msra.mxu0 0.0
        %2097 = vmatprep.subr.mxu0 0.0
        %2098 = vmatpush1.xpose.msra.mxu0 0.0
        %2099 = vmatprep.mubr.f32.mxu0 0.0
        %2100 = vmatmul.mubr.f32.gmra.mrb[0].mxu0 %v2001
        %v2101 = vpop.f32.mrb[0].mxu0
        %v2102 = vadd.f32 0.0, %v2101
        %v2103 = vpop.f32.mrb[0].mxu0
        %2104 = vdwg.mxu0
        %v2105 = vsel %vm988, %v2102, -1e+30
        %2106 = vmax.xlane.f32.xlu0 %v2105
        %v2107 = vpop.xlane.xlu0 %2106
        %v2108 = vsub.f32 %v2105, %v2107
        %v2109 = vmul.f32 %v2108, 1.442695
        %v2110 = vpow.pop %v2109
        %2111 = vadd.xlane.f32.xlu0 %v2110
        %v2112 = vpop.xlane.xlu0 %2111
        %v2113 = vrcp.pop %v2112
        %v2114 = vmul.f32 %v2110, %v2113
        %v2115 = vadd.f32 %v1772, %v2114
        %2116 = vrot.lane.b32.xlu0 %v908, 104
        %v2117 = vpop.permute.xlu0 %2116
        %2118 = vrot.lane.b32.xlu0 %v913, 104
        %v2119 = vpop.permute.xlu0 %2118
        %2120 = vrot.lane.b32.xlu0 %v918, 104
        %v2121 = vpop.permute.xlu0 %2120
        %2122 = vrot.lane.b32.xlu0 %v923, 104
        %v2123 = vpop.permute.xlu0 %2122
        %2124 = vrot.lane.b32.xlu0 %v928, 104
        %v2125 = vpop.permute.xlu0 %2124
        %2126 = vrot.lane.b32.xlu0 %v933, 104
        %v2127 = vpop.permute.xlu0 %2126
        %2128 = vrot.lane.b32.xlu0 %v938, 104
        %v2129 = vpop.permute.xlu0 %2128
        %2130 = vrot.lane.b32.xlu0 %v943, 104
        %v2131 = vpop.permute.xlu0 %2130
        %2132 = vrot.lane.b32.xlu0 %v948, 104
        %v2133 = vpop.permute.xlu0 %2132
        %2134 = vrot.lane.b32.xlu0 %v953, 104
        %v2135 = vpop.permute.xlu0 %2134
        %2136 = vrot.lane.b32.xlu0 %v958, 104
        %v2137 = vpop.permute.xlu0 %2136
        %2138 = vrot.lane.b32.xlu0 %v963, 104
        %v2139 = vpop.permute.xlu0 %2138
        %2140 = vrot.lane.b32.xlu0 %v968, 104
        %v2141 = vpop.permute.xlu0 %2140
        %2142 = vrot.lane.b32.xlu0 %v973, 104
        %v2143 = vpop.permute.xlu0 %2142
        %2144 = vrot.lane.b32.xlu0 %v978, 104
        %v2145 = vpop.permute.xlu0 %2144
        %2146 = vrot.lane.b32.xlu0 %v983, 104
        %v2147 = vpop.permute.xlu0 %2146
        %2164 = vmatprep.subr.mxu0 0.0
        %2165 = vmatpush1.msra.mxu0 %v2117
        %2166 = vmatprep.subr.mxu0 0.0
        %2167 = vmatpush1.msra.mxu0 %v2119
        %2168 = vmatprep.subr.mxu0 0.0
        %2169 = vmatpush1.msra.mxu0 %v2121
        %2170 = vmatprep.subr.mxu0 0.0
        %2171 = vmatpush1.msra.mxu0 %v2123
        %2172 = vmatprep.subr.mxu0 0.0
        %2173 = vmatpush1.msra.mxu0 %v2125
        %2174 = vmatprep.subr.mxu0 0.0
        %2175 = vmatpush1.msra.mxu0 %v2127
        %2176 = vmatprep.subr.mxu0 0.0
        %2177 = vmatpush1.msra.mxu0 %v2129
        %2178 = vmatprep.subr.mxu0 0.0
        %2179 = vmatpush1.msra.mxu0 %v2131
        %2180 = vmatprep.subr.mxu0 0.0
        %2181 = vmatpush1.msra.mxu0 %v2133
        %2182 = vmatprep.subr.mxu0 0.0
        %2183 = vmatpush1.msra.mxu0 %v2135
        %2184 = vmatprep.subr.mxu0 0.0
        %2185 = vmatpush1.msra.mxu0 %v2137
        %2186 = vmatprep.subr.mxu0 0.0
        %2187 = vmatpush1.msra.mxu0 %v2139
        %2188 = vmatprep.subr.mxu0 0.0
        %2189 = vmatpush1.msra.mxu0 %v2141
        %2190 = vmatprep.subr.mxu0 0.0
        %2191 = vmatpush1.msra.mxu0 %v2143
        %2192 = vmatprep.subr.mxu0 0.0
        %2193 = vmatpush1.msra.mxu0 %v2145
        %2194 = vmatprep.subr.mxu0 0.0
        %2195 = vmatpush1.msra.mxu0 %v2147
        %2196 = vmatprep.subr.mxu0 0.0
        %2197 = vmatpush1.msra.mxu0 0.0
        %2198 = vmatprep.subr.mxu0 0.0
        %2199 = vmatpush1.msra.mxu0 0.0
        %2200 = vmatprep.subr.mxu0 0.0
        %2201 = vmatpush1.msra.mxu0 0.0
        %2202 = vmatprep.subr.mxu0 0.0
        %2203 = vmatpush1.msra.mxu0 0.0
        %2204 = vmatprep.subr.mxu0 0.0
        %2205 = vmatpush1.msra.mxu0 0.0
        %2206 = vmatprep.subr.mxu0 0.0
        %2207 = vmatpush1.msra.mxu0 0.0
        %2208 = vmatprep.subr.mxu0 0.0
        %2209 = vmatpush1.msra.mxu0 0.0
        %2210 = vmatprep.subr.mxu0 0.0
        %2211 = vmatpush1.msra.mxu0 0.0
        %2212 = vmatprep.subr.mxu0 0.0
        %2213 = vmatpush1.msra.mxu0 0.0
        %2214 = vmatprep.subr.mxu0 0.0
        %2215 = vmatpush1.msra.mxu0 0.0
        %2216 = vmatprep.subr.mxu0 0.0
        %2217 = vmatpush1.msra.mxu0 0.0
        %2218 = vmatprep.subr.mxu0 0.0
        %2219 = vmatpush1.msra.mxu0 0.0
        %2220 = vmatprep.subr.mxu0 0.0
        %2221 = vmatpush1.msra.mxu0 0.0
        %2222 = vmatprep.subr.mxu0 0.0
        %2223 = vmatpush1.msra.mxu0 0.0
        %2224 = vmatprep.subr.mxu0 0.0
        %2225 = vmatpush1.msra.mxu0 0.0
        %2226 = vmatprep.subr.mxu0 0.0
        %2227 = vmatpush1.msra.mxu0 0.0
        %2228 = vmatprep.mubr.f32.mxu0 0.0
        %2229 = vmatmul.mubr.f32.gmra.mrb[0].mxu0 %v2114
        %v2230 = vpop.f32.mrb[0].mxu0
        %v2231 = vadd.f32 0.0, %v2230
        %v2232 = vpop.f32.mrb[0].mxu0
        %2233 = vdwg.mxu0
        %s2234 = scalar_lea.vmem %s9, 24
        %v2235 = vld [vmem:[%s2234] sm:$0xff]
        %v2237 = vsel %vm989, %v2231, 0
        %2239 = vmatprep.subr.mxu0 0.0
        %2240 = vmatpush1.msra.mxu0 %v2235
        %2241 = vmatprep.subr.mxu0 0.0
        %2242 = vmatpush1.msra.mxu0 0.0
        %2243 = vmatprep.subr.mxu0 0.0
        %2244 = vmatpush1.msra.mxu0 0.0
        %2245 = vmatprep.subr.mxu0 0.0
        %2246 = vmatpush1.msra.mxu0 0.0
        %2247 = vmatprep.subr.mxu0 0.0
        %2248 = vmatpush1.msra.mxu0 0.0
        %2249 = vmatprep.subr.mxu0 0.0
        %2250 = vmatpush1.msra.mxu0 0.0
        %2251 = vmatprep.subr.mxu0 0.0
        %2252 = vmatpush1.msra.mxu0 0.0
        %2253 = vmatprep.subr.mxu0 0.0
        %2254 = vmatpush1.msra.mxu0 0.0
        %2255 = vmatprep.subr.mxu0 0.0
        %2256 = vmatpush1.msra.mxu0 0.0
        %2257 = vmatprep.subr.mxu0 0.0
        %2258 = vmatpush1.msra.mxu0 0.0
        %2259 = vmatprep.subr.mxu0 0.0
        %2260 = vmatpush1.msra.mxu0 0.0
        %2261 = vmatprep.subr.mxu0 0.0
        %2262 = vmatpush1.msra.mxu0 0.0
        %2263 = vmatprep.subr.mxu0 0.0
        %2264 = vmatpush1.msra.mxu0 0.0
        %2265 = vmatprep.subr.mxu0 0.0
        %2266 = vmatpush1.msra.mxu0 0.0
        %2267 = vmatprep.subr.mxu0 0.0
        %2268 = vmatpush1.msra.mxu0 0.0
        %2269 = vmatprep.subr.mxu0 0.0
        %2270 = vmatpush1.msra.mxu0 0.0
        %2271 = vmatprep.subr.mxu0 0.0
        %2272 = vmatpush1.msra.mxu0 0.0
        %2273 = vmatprep.subr.mxu0 0.0
        %2274 = vmatpush1.msra.mxu0 0.0
        %2275 = vmatprep.subr.mxu0 0.0
        %2276 = vmatpush1.msra.mxu0 0.0
        %2277 = vmatprep.subr.mxu0 0.0
        %2278 = vmatpush1.msra.mxu0 0.0
        %2279 = vmatprep.subr.mxu0 0.0
        %2280 = vmatpush1.msra.mxu0 0.0
        %2281 = vmatprep.subr.mxu0 0.0
        %2282 = vmatpush1.msra.mxu0 0.0
        %2283 = vmatprep.subr.mxu0 0.0
        %2284 = vmatpush1.msra.mxu0 0.0
        %2285 = vmatprep.subr.mxu0 0.0
        %2286 = vmatpush1.msra.mxu0 0.0
        %2287 = vmatprep.subr.mxu0 0.0
        %2288 = vmatpush1.msra.mxu0 0.0
        %2289 = vmatprep.subr.mxu0 0.0
        %2290 = vmatpush1.msra.mxu0 0.0
        %2291 = vmatprep.subr.mxu0 0.0
        %2292 = vmatpush1.msra.mxu0 0.0
        %2293 = vmatprep.subr.mxu0 0.0
        %2294 = vmatpush1.msra.mxu0 0.0
        %2295 = vmatprep.subr.mxu0 0.0
        %2296 = vmatpush1.msra.mxu0 0.0
        %2297 = vmatprep.subr.mxu0 0.0
        %2298 = vmatpush1.msra.mxu0 0.0
        %2299 = vmatprep.subr.mxu0 0.0
        %2300 = vmatpush1.msra.mxu0 0.0
        %2301 = vmatprep.subr.mxu0 0.0
        %2302 = vmatpush1.msra.mxu0 0.0
        %2303 = vmatprep.mubr.f32.mxu0 0.0
        %2304 = vmatmul.mubr.f32.gmra.mrb[0].mxu0 %v2237
        %v2305 = vpop.f32.mrb[0].mxu0
        %v2306 = vadd.f32 0.0, %v2305
        %v2307 = vpop.f32.mrb[0].mxu0
        %2308 = vdwg.mxu0
        %v2309 = vadd.f32 %v1966, %v2306
        %v2310 = vld [vmem:[%s10] sm:$0x1]
        %v2312 = vlaneseq
        %v2313 = vshrl.u32 %v2312, 7
        %v2314 = vsub.s32 0, %v2313
        %v2315 = vrot.slane %v2310, %v2314
        %v2317 = vadd.f32 %v2309, %v2315
        %2318 = vst.msk [vmem:[%s438] sm:$0xff] %vm504, %v2317
        %v2319 = vmul.f32 %v2115, 0.25
        %2320 = vst [vmem:[%s445] sm:$0xff] %v2319
        %s2321 = sand.u32 %s284, 1
        %s2322 = scalar_lea.sflag [#allocation3], %s2321
        %s2323 = sand.u32 %s284, 1
        %s2324 = smul.addr %s2323, 8
        %s2325 = scalar_lea.vmem [#allocation2], %s2324
        %s2326 = sand.u32 %s310, 1
        %s2327 = scalar_lea.sflag [#allocation5], %s2326
        %s2328 = sand.u32 %s310, 1
        %s2329 = smul.addr %s2328, 8
        %s2330 = scalar_lea.vmem [#allocation4], %s2329
        // Predicated region
        $region65: #{tpu_custom_call.1} parent=63 // pred_check
          %p2331 = pneg %p294
        $region66: #{tpu_custom_call.1} parent=63 // pred_check_branch
          %2333 = sbr.rel (%p2331) target = $region68
        $region67: #{tpu_custom_call.1} parent=63 // pred_region
          %s2335 = ssub.s32 128, 128
          %2336 = vsyncadd %s2322, %s2335
          %s2337 = smul.addr %s30, 128
          %s2338 = scalar_lea.hbm %s11, %s2337
          %s2340 = sshll.u32 %s2325, 4
          %s2341 = int_to_ptr.vmem [resolvable:$true] %s2340
          %2343 = dma.vmem_to_hbm [thread:$0]  %s2341, 128, %s2338, %s2322
        $region68: #{tpu_custom_call.1} parent=63 // pred_fallthru
          _
        // Predicated region
        $region69: #{tpu_custom_call.1} parent=63 // pred_check
          %p2344 = pneg %p320
        $region70: #{tpu_custom_call.1} parent=63 // pred_check_branch
          %2346 = sbr.rel (%p2344) target = $region72
        $region71: #{tpu_custom_call.1} parent=63 // pred_region
          %s2348 = ssub.s32 128, 128
          %2349 = vsyncadd %s2327, %s2348
          %s2350 = smul.addr %s30, 128
          %s2351 = scalar_lea.hbm %s12, %s2350
          %s2353 = sshll.u32 %s2330, 4
          %s2354 = int_to_ptr.vmem [resolvable:$true] %s2353
          %2356 = dma.vmem_to_hbm [thread:$0]  %s2354, 128, %s2351, %s2327
        $region72: #{tpu_custom_call.1} parent=63 // pred_fallthru
          _
      $region64: #{tpu_custom_call.1} parent=5 // pred_fallthru
        _
      %p2357 = scmp.le.s32.totalorder 2, %s25
      // Predicated region
      $region73: #{tpu_custom_call.1} parent=5 // pred_check
        %p2358 = pneg %p2357
      $region74: #{tpu_custom_call.1} parent=5 // pred_check_branch
        %2360 = sbr.rel (%p2358) target = $region76
      $region75: #{tpu_custom_call.1} parent=5 // pred_region
        %s2361 = ssub.s32 %s25, 2
        // Predicated region
        $region77: #{tpu_custom_call.1} parent=75 // pred_check
          %p2362 = pneg %p300
        $region78: #{tpu_custom_call.1} parent=75 // pred_check_branch
          %2364 = sbr.rel (%p2362) target = $region80
        $region79: #{tpu_custom_call.1} parent=75 // pred_region
          %s2365 = sand.u32 %s285, 1
          %s2366 = scalar_lea.sflag [#allocation3], %s2365
          %s2367 = sand.u32 %s285, 1
          %s2368 = smul.addr %s2367, 8
          %s2369 = scalar_lea.vmem [#allocation2], %s2368
          %2370 = dma.done %s2366, 128
        $region80: #{tpu_custom_call.1} parent=75 // pred_fallthru
          _
        // Predicated region
        $region81: #{tpu_custom_call.1} parent=75 // pred_check
          %p2371 = pneg %p326
        $region82: #{tpu_custom_call.1} parent=75 // pred_check_branch
          %2373 = sbr.rel (%p2371) target = $region84
        $region83: #{tpu_custom_call.1} parent=75 // pred_region
          %s2374 = sand.u32 %s311, 1
          %s2375 = scalar_lea.sflag [#allocation5], %s2374
          %s2376 = sand.u32 %s311, 1
          %s2377 = smul.addr %s2376, 8
          %s2378 = scalar_lea.vmem [#allocation4], %s2377
          %2379 = dma.done %s2375, 128
        $region84: #{tpu_custom_call.1} parent=75 // pred_fallthru
          _
      $region76: #{tpu_custom_call.1} parent=5 // pred_fallthru
        _
    $region6: #{tpu_custom_call.1} parent=1 // loop_footer
      %s29 = sadd.s32 1, %s25
    $region7: #{tpu_custom_call.1} parent=1 // loop_footer_branch
      %24 = sbr.rel target = $region3
    $region8: #{tpu_custom_call.1} parent=1 // loop_exit
      _
    %2380 = vsyncpa [#allocation3], 1
    %s2381 = scalar_lea.sflag [#allocation3], 1
    %2382 = vsyncpa %s2381, 1
    %2383 = vsyncpa [#allocation5], 1
    %s2384 = scalar_lea.sflag [#allocation5], 1
    %2385 = vsyncpa %s2384, 1

</llo_original>
